<compile_context>
chip_gen: v6e
topology: v6e:2x2x1
jax: 0.10.0
libtpu: 0.0.40
codegen_flags: <defaults>
</compile_context>

<pallas_src>
import functools

import jax
import jax.numpy as jnp
from jax.experimental import pallas as pl
from jax.experimental.pallas import tpu as pltpu

EPS = 1e-5
LANE = 128
SUBLANE = 8


def _round_up(x, m):
    return (x + m - 1) // m * m


# ----------------------------- fused Pallas kernel -----------------------------

def _fused_net_kernel(a_ref, h0_ref, wcat_ref, bias_ref, pool_ref,
                      w0_ref, b0_ref, w1_ref, b1_ref, w2_ref, b2_ref,
                      out_ref, h_sc, jk_sc, cat_sc,
                      *, num_layer, jk_mode, residual, tm, emb_dim):
    D = emb_dim
    l = pl.program_id(0)          # 0 = feature-init pass, 1..num_layer = SAGE layers
    i = pl.program_id(1)          # node row block
    nblk = pl.num_programs(1)
    row = pl.multiple_of(i * tm, tm)

    # ---- pass 0: stream padded node features into the ping-pong scratch ----
    @pl.when(l == 0)
    def _():
        blk = h0_ref[...]                                   # (tm, D) bf16
        h_sc[0, pl.ds(row, tm), :] = blk
        if jk_mode == "sum":
            # JK 'sum' in the reference = h_list[0] + ... + h_list[num_layer-1]
            jk_sc[pl.ds(row, tm), :] = blk.astype(jnp.float32)

    # ---- passes 1..num_layer: one SAGEConv + folded-BN (+ReLU) per row block ----
    @pl.when(l >= 1)
    def _():
        slot_r = (l + 1) % 2      # == (l - 1) % 2 for l >= 1 : previous layer's h
        slot_w = l % 2            # this layer's h

        a_blk = a_ref[...]                                  # (tm, Np) bf16 (streamed)
        h_prev = h_sc[slot_r]                               # (Np, D)  bf16, resident
        h_blk = h_sc[slot_r, pl.ds(row, tm), :]             # (tm, D)   bf16

        # mean aggregation over neighbours: (tm, Np) @ (Np, D), f32 accumulate on MXU
        agg = jnp.dot(a_blk, h_prev, preferred_element_type=jnp.float32)

        # fused K=2D contraction [agg | h] @ [wl'; wr'] via a reused VMEM scratch
        # (no fresh concatenate buffer per layer).
        cat_sc[:, :D] = agg.astype(jnp.bfloat16)
        cat_sc[:, D:] = h_blk
        hn = jnp.dot(cat_sc[...], wcat_ref[0],
                     preferred_element_type=jnp.float32) + bias_ref[0]

        # ReLU on all but the last layer; dropout = identity in eval mode.
        hn = jnp.where(l < num_layer, jnp.maximum(hn, 0.0), hn)
        if residual:
            hn = hn + h_blk.astype(jnp.float32)

        h_sc[slot_w, pl.ds(row, tm), :] = hn.astype(jnp.bfloat16)

        if jk_mode == "sum":
            @pl.when(l < num_layer)       # last layer's output is excluded (reference)
            def _():
                jk_sc[pl.ds(row, tm), :] += hn

    # ---- final grid step: global_add_pool + 3-layer MLP head (folded BN) ----
    @pl.when(jnp.logical_and(l == num_layer, i == nblk - 1))
    def _():
        if jk_mode == "sum":
            nrep = jk_sc[...].astype(jnp.bfloat16)          # (Np, D)
        else:
            nrep = h_sc[num_layer % 2]                      # last layer output (bf16)

        # global_add_pool as dense matmul: (Gp, Np) @ (Np, D)
        hg = jnp.dot(pool_ref[...], nrep, preferred_element_type=jnp.float32)
        # Linear(D, 2D) -> folded BN -> ReLU
        h1 = jnp.maximum(
            jnp.dot(hg.astype(jnp.bfloat16), w0_ref[...],
                    preferred_element_type=jnp.float32) + b0_ref[...], 0.0)
        # Linear(2D, D) -> folded BN -> ReLU
        h2 = jnp.maximum(
            jnp.dot(h1.astype(jnp.bfloat16), w1_ref[...],
                    preferred_element_type=jnp.float32) + b1_ref[...], 0.0)
        # Linear(D, num_tasks) (lane-padded to 128)
        out_ref[...] = jnp.dot(h2.astype(jnp.bfloat16), w2_ref[...],
                               preferred_element_type=jnp.float32) + b2_ref[...]


def fused_forward(a_pad, h0_pad, wcat_all, bias_all, pool_pad, head_ws,
                  *, num_layer, jk_mode, residual, tm, emb_dim):
    Np = a_pad.shape[0]
    D = emb_dim
    Gp = pool_pad.shape[0]
    Tp = head_ws["w2"].shape[1]
    assert Np % tm == 0
    nblk = Np // tm
    grid = (num_layer + 1, nblk)

    # A row blocks are streamed per layer; the init pass (l==0) pins block 0 only.
    a_map = lambda l, i: (jnp.where(l == 0, 0, i), 0)
    # h0 row blocks are only consumed at l==0; afterwards the index stays constant
    # so Pallas skips the redundant DMA.
    h0_map = lambda l, i: (jnp.where(l == 0, i, 0), 0)
    # Layer weights selected by grid index (clamped for the init pass).
    w_map = lambda l, i: (jnp.maximum(l - 1, 0), 0, 0)
    const2 = lambda l, i: (0, 0)

    in_specs = [
        pl.BlockSpec((tm, Np), a_map),            # A mean-aggregation row block (bf16)
        pl.BlockSpec((tm, D), h0_map),            # node features row block (bf16)
        pl.BlockSpec((1, 2 * D, D), w_map),       # stacked [wl'; wr'] per layer (bf16)
        pl.BlockSpec((1, 1, D), w_map),           # stacked folded bias per layer (f32)
        pl.BlockSpec((Gp, Np), const2),           # pool matrix (bf16)
        pl.BlockSpec((D, 2 * D), const2),         # head w0
        pl.BlockSpec((1, 2 * D), const2),         # head b0
        pl.BlockSpec((2 * D, D), const2),         # head w1
        pl.BlockSpec((1, D), const2),             # head b1
        pl.BlockSpec((D, Tp), const2),            # head w2 (lane-padded)
        pl.BlockSpec((1, Tp), const2),            # head b2
    ]
    out_spec = pl.BlockSpec((Gp, Tp), const2)

    # Size the scoped VMEM limit from actual usage (+50% headroom), instead of the
    # 16/32 MiB default.  Caps well below v7x's 64 MiB physical for these shapes.
    vmem_bytes = (
        2 * tm * Np * 2                       # A row block, double-buffered (bf16)
        + 2 * tm * D * 2                      # h0 row block, double-buffered (bf16)
        + 2 * (2 * D * D * 2 + D * 4)         # one layer's weights+bias, double-buffered
        + Gp * Np * 2                         # pool matrix
        + (D * 2 * D + 2 * D * D + D * Tp) * 2 + (2 * D + D + Tp) * 4   # head weights
        + Gp * Tp * 4                         # output block
        + 2 * Np * D * 2                      # h ping-pong scratch (bf16)
        + Np * D * 4                          # jk scratch (f32)
        + tm * 2 * D * 2                      # cat scratch (bf16)
    )
    vmem_bytes = int(1.5 * vmem_bytes) + (4 << 20)
    vmem_bytes = max(min(vmem_bytes, 96 << 20), 32 << 20)

    kern = functools.partial(_fused_net_kernel, num_layer=num_layer, jk_mode=jk_mode,
                             residual=residual, tm=tm, emb_dim=D)
    return pl.pallas_call(
        kern,
        out_shape=jax.ShapeDtypeStruct((Gp, Tp), jnp.float32),
        grid=grid,
        in_specs=in_specs,
        out_specs=out_spec,
        scratch_shapes=[
            pltpu.VMEM((2, Np, D), jnp.bfloat16),   # ping-pong node features
            pltpu.VMEM((Np, D), jnp.float32),       # JK 'sum' accumulator
            pltpu.VMEM((tm, 2 * D), jnp.bfloat16),  # reused [agg | h] matmul operand
        ],
        compiler_params=pltpu.CompilerParams(
            dimension_semantics=("arbitrary", "arbitrary"),
            vmem_limit_bytes=vmem_bytes),
    )(a_pad, h0_pad, wcat_all, bias_all, pool_pad,
      head_ws["w0"], head_ws["b0"], head_ws["w1"], head_ws["b1"],
      head_ws["w2"], head_ws["b2"])


# ------------------------------ parameters --------------------------------

def init_params(key, emb_dim, num_layer, num_tasks, node_vocab, edge_vocab):
    def nrm(k, shape, scale=0.05):
        return scale * jax.random.normal(k, shape, dtype=jnp.float32)

    def bn(k, dim):
        k1, k2, k3, k4 = jax.random.split(k, 4)
        return dict(gamma=1.0 + nrm(k1, (1, dim), 0.1),
                    beta=nrm(k2, (1, dim), 0.05),
                    mean=nrm(k3, (1, dim), 0.05),
                    var=1.0 + 0.1 * jnp.abs(jax.random.normal(k4, (1, dim), dtype=jnp.float32)))

    keys = jax.random.split(key, 8 + 4 * num_layer)
    p = {}
    p["node_emb"] = nrm(keys[0], (node_vocab, emb_dim), 1.0)
    p["edge_emb"] = nrm(keys[1], (edge_vocab, emb_dim), 1.0)   # unused by SAGEConv forward

    p["layers"] = []
    for i in range(num_layer):
        k = jax.random.split(keys[2 + i], 4)
        p["layers"].append(dict(
            wl=nrm(k[0], (emb_dim, emb_dim)),          # lin_l weight, [in, out]
            bl=nrm(k[1], (1, emb_dim)),                # lin_l bias
            wr=nrm(k[2], (emb_dim, emb_dim)),          # lin_r weight (no bias in PyG SAGEConv)
            bn=bn(k[3], emb_dim),
        ))

    kh = jax.random.split(keys[2 + num_layer], 8)
    head_p = dict(
        w0=nrm(kh[0], (emb_dim, 2 * emb_dim)), b0=nrm(kh[1], (1, 2 * emb_dim)),
        w1=nrm(kh[2], (2 * emb_dim, emb_dim)), b1=nrm(kh[3], (1, emb_dim)),
        w2=nrm(kh[4], (emb_dim, num_tasks)),   b2=nrm(kh[5], (1, num_tasks)),
    )
    bn0 = bn(kh[6], 2 * emb_dim)
    bn1 = bn(kh[7], emb_dim)
    head_p.update(g0=bn0["gamma"], be0=bn0["beta"], m0=bn0["mean"], v0=bn0["var"],
                  g1=bn1["gamma"], be1=bn1["beta"], m1=bn1["mean"], v1=bn1["var"])
    p["head"] = head_p
    return p


def prepare_kernel_params(params, num_tasks_padded):
    """Fold eval-mode BatchNorm into weights, stack layer [wl'; wr'], cast MXU ops to bf16."""
    wcats, biases = [], []
    for lp in params["layers"]:
        scale = lp["bn"]["gamma"] * jax.lax.rsqrt(lp["bn"]["var"] + EPS)   # [1, D]
        wl = lp["wl"] * scale
        wr = lp["wr"] * scale
        bias = lp["bl"] * scale + lp["bn"]["beta"] - lp["bn"]["mean"] * scale
        wcats.append(jnp.concatenate([wl, wr], axis=0))                    # [2D, D]
        biases.append(bias)                                                # [1, D]
    wcat_all = jnp.stack(wcats, axis=0).astype(jnp.bfloat16)               # [L, 2D, D]
    bias_all = jnp.stack(biases, axis=0).astype(jnp.float32)               # [L, 1, D]

    hp = params["head"]
    s0 = hp["g0"] * jax.lax.rsqrt(hp["v0"] + EPS)
    w0 = (hp["w0"] * s0).astype(jnp.bfloat16)
    b0 = (hp["b0"] * s0 + hp["be0"] - hp["m0"] * s0).astype(jnp.float32)
    s1 = hp["g1"] * jax.lax.rsqrt(hp["v1"] + EPS)
    w1 = (hp["w1"] * s1).astype(jnp.bfloat16)
    b1 = (hp["b1"] * s1 + hp["be1"] - hp["m1"] * s1).astype(jnp.float32)

    D, T = hp["w2"].shape
    Tp = num_tasks_padded
    w2 = jnp.zeros((D, Tp), jnp.float32).at[:, :T].set(hp["w2"]).astype(jnp.bfloat16)
    b2 = jnp.zeros((1, Tp), jnp.float32).at[:, :T].set(hp["b2"])
    head_ws = dict(w0=w0, b0=b0, w1=w1, b1=b1, w2=w2, b2=b2)
    return wcat_all, bias_all, head_ws


# ------------------------------- forward ----------------------------------

def net_forward(params, x, edge_index, edge_attr, batch, num_graphs,
                num_layer=4, JK="sum", residual=False):
    del edge_attr  # EdgeEncoder output is never consumed by SAGEConv(h, edge_index)
    N = x.shape[0]
    D = params["node_emb"].shape[1]
    num_tasks = params["head"]["w2"].shape[1]

    # MXU / lane-friendly padding (zero rows/cols contribute nothing through A / pool).
    Np = max(_round_up(N, LANE), LANE)
    tm = 256 if Np % 256 == 0 else 128          # node-row block streamed per grid step
    Gp = max(_round_up(num_graphs, SUBLANE), SUBLANE)
    Tp = LANE                                   # lane-dense head output, sliced below

    # NodeEncoder: sum of per-feature embedding lookups, built at padded size (XLA glue).
    h0 = jnp.zeros((Np, D), jnp.float32)
    for c in range(x.shape[1]):
        h0 = h0.at[:N].add(jnp.take(params["node_emb"], x[:, c], axis=0))
    h0 = h0.astype(jnp.bfloat16)

    # Normalized mean-aggregation adjacency built directly into the padded buffer:
    # A[i, j] = #edges(j -> i) / in_deg(i).  Padded rows/cols stay zero.
    src, tgt = edge_index[0], edge_index[1]
    A = jnp.zeros((Np, Np), jnp.float32).at[tgt, src].add(1.0)
    deg = jnp.sum(A, axis=1, keepdims=True)
    A = (A / jnp.maximum(deg, 1.0)).astype(jnp.bfloat16)

    # global_add_pool matrix; padded nodes get an invalid graph id so they pool to nothing.
    batch_p = jnp.full((Np,), -1, jnp.int32).at[:N].set(batch)
    P = (batch_p[None, :] == jnp.arange(Gp, dtype=jnp.int32)[:, None]).astype(jnp.bfloat16)

    wcat_all, bias_all, head_ws = prepare_kernel_params(params, Tp)

    out_pad = fused_forward(A, h0, wcat_all, bias_all, P, head_ws,
                            num_layer=num_layer, jk_mode=JK, residual=residual,
                            tm=tm, emb_dim=D)
    return out_pad[:num_graphs, :num_tasks]


# --------------------------- pure-JAX reference ----------------------------

def net_forward_reference(params, x, edge_index, batch, num_graphs,
                          num_layer=4, JK="sum", residual=False):
    N = x.shape[0]
    D = params["node_emb"].shape[1]
    h0 = jnp.zeros((N, D), jnp.float32)
    for c in range(x.shape[1]):
        h0 = h0 + jnp.take(params["node_emb"], x[:, c], axis=0)
    src, tgt = edge_index[0], edge_index[1]
    A = jnp.zeros((N, N), jnp.float32).at[tgt, src].add(1.0)
    deg = jnp.sum(A, axis=1, keepdims=True)
    A = A / jnp.maximum(deg, 1.0)

    def bn_apply(h, bnp):
        return (h - bnp["mean"]) * bnp["gamma"] * jax.lax.rsqrt(bnp["var"] + EPS) + bnp["beta"]

    h_list = [h0]
    for layer in range(num_layer):
        lp = params["layers"][layer]
        agg = A @ h_list[layer]
        h = agg @ lp["wl"] + lp["bl"] + h_list[layer] @ lp["wr"]
        h = bn_apply(h, lp["bn"])
        if layer != num_layer - 1:
            h = jnp.maximum(h, 0.0)
        if residual:
            h = h + h_list[layer]
        h_list.append(h)
    if JK == "last":
        nrep = h_list[-1]
    else:
        nrep = h_list[0]
        for layer in range(1, num_layer):
            nrep = nrep + h_list[layer]
    P = (batch[None, :] == jnp.arange(num_graphs)[:, None]).astype(jnp.float32)
    hg = P @ nrep
    hp = params["head"]
    h1 = jnp.maximum((hg @ hp["w0"] + hp["b0"] - hp["m0"]) * hp["g0"]
                     * jax.lax.rsqrt(hp["v0"] + EPS) + hp["be0"], 0.0)
    h2 = jnp.maximum((h1 @ hp["w1"] + hp["b1"] - hp["m1"]) * hp["g1"]
                     * jax.lax.rsqrt(hp["v1"] + EPS) + hp["be1"], 0.0)
    return h2 @ hp["w2"] + hp["b2"]


# --------------------------------- main ------------------------------------

if __name__ == "__main__":
    N, E, G = 64, 256, 8            # nodes, edges, graphs
    EMB_DIM, NUM_LAYER, NUM_TASKS = 128, 4, 1
    NODE_VOCAB, EDGE_VOCAB = 16, 8

    key = jax.random.PRNGKey(0)
    kp, kx, ke, kei = jax.random.split(key, 4)

    params = init_params(kp, EMB_DIM, NUM_LAYER, NUM_TASKS, NODE_VOCAB, EDGE_VOCAB)

    x = jax.random.randint(kx, (N, 1), 0, NODE_VOCAB, dtype=jnp.int32)
    edge_attr = jax.random.randint(ke, (E, 1), 0, EDGE_VOCAB, dtype=jnp.int32)
    edge_index = jax.random.randint(kei, (2, E), 0, N, dtype=jnp.int32)
    batch = (jnp.arange(N, dtype=jnp.int32) // (N // G)).astype(jnp.int32)

    out = net_forward(params, x, edge_index, edge_attr, batch, G,
                      num_layer=NUM_LAYER, JK="sum", residual=False)
    out = jax.block_until_ready(out)
    assert out.shape == (G, NUM_TASKS)
    assert bool(jnp.all(jnp.isfinite(out)))

    # Loose tolerance check against an all-f32 pure-JAX reference (bf16 MXU rounding).
    ref = net_forward_reference(params, x, edge_index, batch, G,
                                num_layer=NUM_LAYER, JK="sum", residual=False)
    assert bool(jnp.allclose(out, ref, rtol=1e-1, atol=1e-1))

    print("KERNEL_OK")
</pallas_src>

<mosaic_0001>
module attributes {stable_mosaic.version = 11 : i64} {
  func.func @_fused_net_kernel(%arg0: i32, %arg1: i32, %arg2: memref<128x128xbf16, #tpu.memory_space<vmem>>, %arg3: memref<128x128xbf16, #tpu.memory_space<vmem>>, %arg4: memref<1x256x128xbf16, #tpu.memory_space<vmem>>, %arg5: memref<1x1x128xf32, #tpu.memory_space<vmem>>, %arg6: memref<8x128xbf16, #tpu.memory_space<vmem>>, %arg7: memref<128x256xbf16, #tpu.memory_space<vmem>>, %arg8: memref<1x256xf32, #tpu.memory_space<vmem>>, %arg9: memref<256x128xbf16, #tpu.memory_space<vmem>>, %arg10: memref<1x128xf32, #tpu.memory_space<vmem>>, %arg11: memref<128x128xbf16, #tpu.memory_space<vmem>>, %arg12: memref<1x128xf32, #tpu.memory_space<vmem>>, %arg13: memref<8x128xf32, #tpu.memory_space<vmem>>, %arg14: memref<2x128x128xbf16, #tpu.memory_space<vmem>>, %arg15: memref<128x128xf32, #tpu.memory_space<vmem>>, %arg16: memref<128x256xbf16, #tpu.memory_space<vmem>>) attributes {dimension_semantics = [#tpu.dimension_semantics<arbitrary>, #tpu.dimension_semantics<arbitrary>], iteration_bounds = array<i64: 5, 1>, scalar_prefetch = 0 : i64, scratch_operands = 3 : i64, tpu.core_type = #tpu.core_type<tc>, window_params = [{transform_indices = @transform_0, window_bounds = array<i64: 128, 128>}, {transform_indices = @transform_1, window_bounds = array<i64: 128, 128>}, {transform_indices = @transform_2, window_bounds = array<i64: 1, 256, 128>}, {transform_indices = @transform_3, window_bounds = array<i64: 1, 1, 128>}, {pipeline_mode = #tpu.pipeline_mode<synchronous>, transform_indices = @transform_4, window_bounds = array<i64: 8, 128>}, {pipeline_mode = #tpu.pipeline_mode<synchronous>, transform_indices = @transform_5, window_bounds = array<i64: 128, 256>}, {pipeline_mode = #tpu.pipeline_mode<synchronous>, transform_indices = @transform_6, window_bounds = array<i64: 1, 256>}, {pipeline_mode = #tpu.pipeline_mode<synchronous>, transform_indices = @transform_7, window_bounds = array<i64: 256, 128>}, {pipeline_mode = #tpu.pipeline_mode<synchronous>, transform_indices = @transform_8, window_bounds = array<i64: 1, 128>}, {pipeline_mode = #tpu.pipeline_mode<synchronous>, transform_indices = @transform_9, window_bounds = array<i64: 128, 128>}, {pipeline_mode = #tpu.pipeline_mode<synchronous>, transform_indices = @transform_10, window_bounds = array<i64: 1, 128>}, {pipeline_mode = #tpu.pipeline_mode<synchronous>, transform_indices = @transform_11, window_bounds = array<i64: 8, 128>}]} {
    %c128_i32 = arith.constant 128 : i32
    %0 = arith.muli %arg1, %c128_i32 : i32
    %1 = tpu.assume_multiple %0, 128 : i32
    %c0_i32 = arith.constant 0 : i32
    %2 = arith.cmpi eq, %arg0, %c0_i32 : i32
    %3 = arith.extui %2 : i1 to i32
    %c0_i32_0 = arith.constant 0 : i32
    %4 = arith.cmpi ne, %3, %c0_i32_0 : i32
    scf.if %4 {
      %c0 = arith.constant 0 : index
      %c0_4 = arith.constant 0 : index
      %13 = vector.load %arg3[%c0, %c0_4] : memref<128x128xbf16, #tpu.memory_space<vmem>>, vector<128x128xbf16>
      %c0_5 = arith.constant 0 : index
      %14 = arith.index_cast %1 : i32 to index
      %c0_6 = arith.constant 0 : index
      %15 = vector.load %arg14[%c0_5, %14, %c0_6] : memref<2x128x128xbf16, #tpu.memory_space<vmem>>, vector<1x128x128xbf16>
      %16 = vector.shape_cast %15 : vector<1x128x128xbf16> to vector<128x128xbf16>
      %17 = vector.shape_cast %13 : vector<128x128xbf16> to vector<1x128x128xbf16>
      tpu.vector_store %arg14[%c0_5, %14, %c0_6], %17 {strides = array<i32>} : memref<2x128x128xbf16, #tpu.memory_space<vmem>>, vector<1x128x128xbf16>,
      %18 = arith.extf %13 : vector<128x128xbf16> to vector<128x128xf32>
      %19 = arith.index_cast %1 : i32 to index
      %c0_7 = arith.constant 0 : index
      %20 = vector.load %arg15[%19, %c0_7] : memref<128x128xf32, #tpu.memory_space<vmem>>, vector<128x128xf32>
      tpu.vector_store %arg15[%19, %c0_7], %18 {strides = array<i32>} : memref<128x128xf32, #tpu.memory_space<vmem>>, vector<128x128xf32>,
    } else {
    }
    %c1_i32 = arith.constant 1 : i32
    %5 = arith.cmpi sge, %arg0, %c1_i32 : i32
    %6 = arith.extui %5 : i1 to i32
    %c0_i32_1 = arith.constant 0 : i32
    %7 = arith.cmpi ne, %6, %c0_i32_1 : i32
    scf.if %7 {
      %c1_i32_4 = arith.constant 1 : i32
      %13 = arith.addi %arg0, %c1_i32_4 : i32
      %c2_i32 = arith.constant 2 : i32
      %c0_i32_5 = arith.constant 0 : i32
      %14 = arith.cmpi eq, %c2_i32, %c0_i32_5 : i32
      %c1_i32_6 = arith.constant 1 : i32
      %15 = arith.select %14, %c1_i32_6, %c2_i32 : i32
      %16 = arith.remsi %13, %15 : i32
      %c0_i32_7 = arith.constant 0 : i32
      %17 = arith.cmpi ne, %16, %c0_i32_7 : i32
      %c0_i32_8 = arith.constant 0 : i32
      %18 = arith.cmpi slt, %16, %c0_i32_8 : i32
      %c0_i32_9 = arith.constant 0 : i32
      %19 = arith.cmpi slt, %15, %c0_i32_9 : i32
      %20 = arith.xori %18, %19 : i1
      %21 = arith.andi %20, %17 : i1
      %22 = arith.addi %16, %15 : i32
      %23 = arith.select %21, %22, %16 : i32
      %c2_i32_10 = arith.constant 2 : i32
      %c0_i32_11 = arith.constant 0 : i32
      %24 = arith.cmpi eq, %c2_i32_10, %c0_i32_11 : i32
      %c1_i32_12 = arith.constant 1 : i32
      %25 = arith.select %24, %c1_i32_12, %c2_i32_10 : i32
      %26 = arith.remsi %arg0, %25 : i32
      %c0_i32_13 = arith.constant 0 : i32
      %27 = arith.cmpi ne, %26, %c0_i32_13 : i32
      %c0_i32_14 = arith.constant 0 : i32
      %28 = arith.cmpi slt, %26, %c0_i32_14 : i32
      %c0_i32_15 = arith.constant 0 : i32
      %29 = arith.cmpi slt, %25, %c0_i32_15 : i32
      %30 = arith.xori %28, %29 : i1
      %31 = arith.andi %30, %27 : i1
      %32 = arith.addi %26, %25 : i32
      %33 = arith.select %31, %32, %26 : i32
      %c0 = arith.constant 0 : index
      %c0_16 = arith.constant 0 : index
      %34 = vector.load %arg2[%c0, %c0_16] : memref<128x128xbf16, #tpu.memory_space<vmem>>, vector<128x128xbf16>
      %35 = arith.index_cast %23 : i32 to index
      %c0_17 = arith.constant 0 : index
      %c0_18 = arith.constant 0 : index
      %36 = vector.load %arg14[%35, %c0_17, %c0_18] : memref<2x128x128xbf16, #tpu.memory_space<vmem>>, vector<1x128x128xbf16>
      %37 = vector.shape_cast %36 : vector<1x128x128xbf16> to vector<128x128xbf16>
      %38 = arith.index_cast %23 : i32 to index
      %39 = arith.index_cast %1 : i32 to index
      %c0_19 = arith.constant 0 : index
      %40 = vector.load %arg14[%38, %39, %c0_19] : memref<2x128x128xbf16, #tpu.memory_space<vmem>>, vector<1x128x128xbf16>
      %41 = vector.shape_cast %40 : vector<1x128x128xbf16> to vector<128x128xbf16>
      %cst = arith.constant dense<0.000000e+00> : vector<128x128xf32>
      %42 = tpu.matmul %34, %37, %cst {dimension_numbers = #tpu.dot_dimension_numbers<[1], [0], [0], [1], [0, 0, 1, 1], [], []>} : vector<128x128xbf16>, vector<128x128xbf16>, vector<128x128xf32> -> vector<128x128xf32>
      %43 = arith.truncf %42 : vector<128x128xf32> to vector<128x128xbf16>
      %c0_20 = arith.constant 0 : index
      %c0_21 = arith.constant 0 : index
      %44 = vector.load %arg16[%c0_20, %c0_21] : memref<128x256xbf16, #tpu.memory_space<vmem>>, vector<128x128xbf16>
      tpu.vector_store %arg16[%c0_20, %c0_21], %43 {strides = array<i32>} : memref<128x256xbf16, #tpu.memory_space<vmem>>, vector<128x128xbf16>,
      %c0_22 = arith.constant 0 : index
      %c128 = arith.constant 128 : index
      %45 = vector.load %arg16[%c0_22, %c128] : memref<128x256xbf16, #tpu.memory_space<vmem>>, vector<128x128xbf16>
      tpu.vector_store %arg16[%c0_22, %c128], %41 {strides = array<i32>} : memref<128x256xbf16, #tpu.memory_space<vmem>>, vector<128x128xbf16>,
      %c0_23 = arith.constant 0 : index
      %c0_24 = arith.constant 0 : index
      %46 = vector.load %arg16[%c0_23, %c0_24] : memref<128x256xbf16, #tpu.memory_space<vmem>>, vector<128x256xbf16>
      %c0_25 = arith.constant 0 : index
      %c0_26 = arith.constant 0 : index
      %c0_27 = arith.constant 0 : index
      %47 = vector.load %arg4[%c0_25, %c0_26, %c0_27] : memref<1x256x128xbf16, #tpu.memory_space<vmem>>, vector<1x256x128xbf16>
      %48 = vector.shape_cast %47 : vector<1x256x128xbf16> to vector<256x128xbf16>
      %cst_28 = arith.constant dense<0.000000e+00> : vector<128x128xf32>
      %49 = tpu.matmul %46, %48, %cst_28 {dimension_numbers = #tpu.dot_dimension_numbers<[1], [0], [0], [1], [0, 0, 1, 1], [], []>} : vector<128x256xbf16>, vector<256x128xbf16>, vector<128x128xf32> -> vector<128x128xf32>
      %c0_29 = arith.constant 0 : index
      %c0_30 = arith.constant 0 : index
      %c0_31 = arith.constant 0 : index
      %50 = vector.load %arg5[%c0_29, %c0_30, %c0_31] : memref<1x1x128xf32, #tpu.memory_space<vmem>>, vector<1x1x128xf32>
      %51 = vector.shape_cast %50 : vector<1x1x128xf32> to vector<1x128xf32>
      %52 = vector.broadcast %51 : vector<1x128xf32> to vector<128x128xf32>
      %53 = arith.addf %49, %52 : vector<128x128xf32>
      %c4_i32_32 = arith.constant 4 : i32
      %54 = arith.cmpi slt, %arg0, %c4_i32_32 : i32
      %cst_33 = arith.constant 0.000000e+00 : f32
      %55 = vector.broadcast %cst_33 : f32 to vector<128x128xf32>
      %56 = arith.maximumf %53, %55 : vector<128x128xf32>
      %57 = arith.select %54, %56, %53 : vector<128x128xf32>
      %58 = arith.truncf %57 : vector<128x128xf32> to vector<128x128xbf16>
      %59 = arith.index_cast %33 : i32 to index
      %60 = arith.index_cast %1 : i32 to index
      %c0_34 = arith.constant 0 : index
      %61 = vector.load %arg14[%59, %60, %c0_34] : memref<2x128x128xbf16, #tpu.memory_space<vmem>>, vector<1x128x128xbf16>
      %62 = vector.shape_cast %61 : vector<1x128x128xbf16> to vector<128x128xbf16>
      %63 = vector.shape_cast %58 : vector<128x128xbf16> to vector<1x128x128xbf16>
      tpu.vector_store %arg14[%59, %60, %c0_34], %63 {strides = array<i32>} : memref<2x128x128xbf16, #tpu.memory_space<vmem>>, vector<1x128x128xbf16>,
      %c4_i32_35 = arith.constant 4 : i32
      %64 = arith.cmpi slt, %arg0, %c4_i32_35 : i32
      %65 = arith.extui %64 : i1 to i32
      %c0_i32_36 = arith.constant 0 : i32
      %66 = arith.cmpi ne, %65, %c0_i32_36 : i32
      scf.if %66 {
        %67 = arith.index_cast %1 : i32 to index
        %c0_37 = arith.constant 0 : index
        %68 = vector.load %arg15[%67, %c0_37] : memref<128x128xf32, #tpu.memory_space<vmem>>, vector<128x128xf32>
        %69 = arith.addf %68, %57 : vector<128x128xf32>
        %70 = arith.index_cast %1 : i32 to index
        %c0_38 = arith.constant 0 : index
        %71 = vector.load %arg15[%70, %c0_38] : memref<128x128xf32, #tpu.memory_space<vmem>>, vector<128x128xf32>
        tpu.vector_store %arg15[%70, %c0_38], %69 {strides = array<i32>} : memref<128x128xf32, #tpu.memory_space<vmem>>, vector<128x128xf32>,
      } else {
      }
    } else {
    }
    %c4_i32 = arith.constant 4 : i32
    %8 = arith.cmpi eq, %arg0, %c4_i32 : i32
    %c0_i32_2 = arith.constant 0 : i32
    %9 = arith.cmpi eq, %arg1, %c0_i32_2 : i32
    %10 = arith.andi %8, %9 : i1
    %11 = arith.extui %10 : i1 to i32
    %c0_i32_3 = arith.constant 0 : i32
    %12 = arith.cmpi ne, %11, %c0_i32_3 : i32
    scf.if %12 {
      %c0 = arith.constant 0 : index
      %c0_4 = arith.constant 0 : index
      %13 = vector.load %arg15[%c0, %c0_4] : memref<128x128xf32, #tpu.memory_space<vmem>>, vector<128x128xf32>
      %14 = arith.truncf %13 : vector<128x128xf32> to vector<128x128xbf16>
      %c0_5 = arith.constant 0 : index
      %c0_6 = arith.constant 0 : index
      %15 = vector.load %arg6[%c0_5, %c0_6] : memref<8x128xbf16, #tpu.memory_space<vmem>>, vector<8x128xbf16>
      %cst = arith.constant dense<0.000000e+00> : vector<8x128xf32>
      %16 = tpu.matmul %15, %14, %cst {dimension_numbers = #tpu.dot_dimension_numbers<[1], [0], [0], [1], [0, 0, 1, 1], [], []>} : vector<8x128xbf16>, vector<128x128xbf16>, vector<8x128xf32> -> vector<8x128xf32>
      %17 = arith.truncf %16 : vector<8x128xf32> to vector<8x128xbf16>
      %c0_7 = arith.constant 0 : index
      %c0_8 = arith.constant 0 : index
      %18 = vector.load %arg7[%c0_7, %c0_8] : memref<128x256xbf16, #tpu.memory_space<vmem>>, vector<128x256xbf16>
      %cst_9 = arith.constant dense<0.000000e+00> : vector<8x256xf32>
      %19 = tpu.matmul %17, %18, %cst_9 {dimension_numbers = #tpu.dot_dimension_numbers<[1], [0], [0], [1], [0, 0, 1, 1], [], []>} : vector<8x128xbf16>, vector<128x256xbf16>, vector<8x256xf32> -> vector<8x256xf32>
      %c0_10 = arith.constant 0 : index
      %c0_11 = arith.constant 0 : index
      %20 = vector.load %arg8[%c0_10, %c0_11] : memref<1x256xf32, #tpu.memory_space<vmem>>, vector<1x256xf32>
      %21 = vector.broadcast %20 : vector<1x256xf32> to vector<8x256xf32>
      %22 = arith.addf %19, %21 : vector<8x256xf32>
      %cst_12 = arith.constant 0.000000e+00 : f32
      %23 = vector.broadcast %cst_12 : f32 to vector<8x256xf32>
      %24 = arith.maximumf %22, %23 : vector<8x256xf32>
      %25 = arith.truncf %24 : vector<8x256xf32> to vector<8x256xbf16>
      %c0_13 = arith.constant 0 : index
      %c0_14 = arith.constant 0 : index
      %26 = vector.load %arg9[%c0_13, %c0_14] : memref<256x128xbf16, #tpu.memory_space<vmem>>, vector<256x128xbf16>
      %cst_15 = arith.constant dense<0.000000e+00> : vector<8x128xf32>
      %27 = tpu.matmul %25, %26, %cst_15 {dimension_numbers = #tpu.dot_dimension_numbers<[1], [0], [0], [1], [0, 0, 1, 1], [], []>} : vector<8x256xbf16>, vector<256x128xbf16>, vector<8x128xf32> -> vector<8x128xf32>
      %c0_16 = arith.constant 0 : index
      %c0_17 = arith.constant 0 : index
      %28 = vector.load %arg10[%c0_16, %c0_17] : memref<1x128xf32, #tpu.memory_space<vmem>>, vector<1x128xf32>
      %29 = vector.broadcast %28 : vector<1x128xf32> to vector<8x128xf32>
      %30 = arith.addf %27, %29 : vector<8x128xf32>
      %cst_18 = arith.constant 0.000000e+00 : f32
      %31 = vector.broadcast %cst_18 : f32 to vector<8x128xf32>
      %32 = arith.maximumf %30, %31 : vector<8x128xf32>
      %33 = arith.truncf %32 : vector<8x128xf32> to vector<8x128xbf16>
      %c0_19 = arith.constant 0 : index
      %c0_20 = arith.constant 0 : index
      %34 = vector.load %arg11[%c0_19, %c0_20] : memref<128x128xbf16, #tpu.memory_space<vmem>>, vector<128x128xbf16>
      %cst_21 = arith.constant dense<0.000000e+00> : vector<8x128xf32>
      %35 = tpu.matmul %33, %34, %cst_21 {dimension_numbers = #tpu.dot_dimension_numbers<[1], [0], [0], [1], [0, 0, 1, 1], [], []>} : vector<8x128xbf16>, vector<128x128xbf16>, vector<8x128xf32> -> vector<8x128xf32>
      %c0_22 = arith.constant 0 : index
      %c0_23 = arith.constant 0 : index
      %36 = vector.load %arg12[%c0_22, %c0_23] : memref<1x128xf32, #tpu.memory_space<vmem>>, vector<1x128xf32>
      %37 = vector.broadcast %36 : vector<1x128xf32> to vector<8x128xf32>
      %38 = arith.addf %35, %37 : vector<8x128xf32>
      %c0_24 = arith.constant 0 : index
      %c0_25 = arith.constant 0 : index
      %39 = vector.load %arg13[%c0_24, %c0_25] : memref<8x128xf32, #tpu.memory_space<vmem>>, vector<8x128xf32>
      tpu.vector_store %arg13[%c0_24, %c0_25], %38 {strides = array<i32>} : memref<8x128xf32, #tpu.memory_space<vmem>>, vector<8x128xf32>,
    } else {
    }
    return
  }
  func.func @transform_0(%arg0: i32, %arg1: i32) -> (i32, i32) {
    %c0_i32 = arith.constant 0 : i32
    %0 = arith.cmpi eq, %arg0, %c0_i32 : i32
    %c0_i32_0 = arith.constant 0 : i32
    %1 = arith.select %0, %c0_i32_0, %arg1 : i32
    %c0_i32_1 = arith.constant 0 : i32
    %c0_i32_2 = arith.constant 0 : i32
    return %1, %c0_i32_1 : i32, i32
  }
  func.func @transform_1(%arg0: i32, %arg1: i32) -> (i32, i32) {
    %c0_i32 = arith.constant 0 : i32
    %0 = arith.cmpi eq, %arg0, %c0_i32 : i32
    %c0_i32_0 = arith.constant 0 : i32
    %1 = arith.select %0, %arg1, %c0_i32_0 : i32
    %c0_i32_1 = arith.constant 0 : i32
    %c0_i32_2 = arith.constant 0 : i32
    return %1, %c0_i32_1 : i32, i32
  }
  func.func @transform_2(%arg0: i32, %arg1: i32) -> (i32, i32, i32) {
    %c1_i32 = arith.constant 1 : i32
    %0 = arith.subi %arg0, %c1_i32 : i32
    %c0_i32 = arith.constant 0 : i32
    %1 = arith.maxsi %0, %c0_i32 : i32
    %c0_i32_0 = arith.constant 0 : i32
    %c0_i32_1 = arith.constant 0 : i32
    %c0_i32_2 = arith.constant 0 : i32
    return %1, %c0_i32_0, %c0_i32_1 : i32, i32, i32
  }
  func.func @transform_3(%arg0: i32, %arg1: i32) -> (i32, i32, i32) {
    %c1_i32 = arith.constant 1 : i32
    %0 = arith.subi %arg0, %c1_i32 : i32
    %c0_i32 = arith.constant 0 : i32
    %1 = arith.maxsi %0, %c0_i32 : i32
    %c0_i32_0 = arith.constant 0 : i32
    %c0_i32_1 = arith.constant 0 : i32
    %c0_i32_2 = arith.constant 0 : i32
    return %1, %c0_i32_0, %c0_i32_1 : i32, i32, i32
  }
  func.func @transform_4(%arg0: i32, %arg1: i32) -> (i32, i32) {
    %c0_i32 = arith.constant 0 : i32
    %c0_i32_0 = arith.constant 0 : i32
    %c0_i32_1 = arith.constant 0 : i32
    return %c0_i32, %c0_i32_0 : i32, i32
  }
  func.func @transform_5(%arg0: i32, %arg1: i32) -> (i32, i32) {
    %c0_i32 = arith.constant 0 : i32
    %c0_i32_0 = arith.constant 0 : i32
    %c0_i32_1 = arith.constant 0 : i32
    return %c0_i32, %c0_i32_0 : i32, i32
  }
  func.func @transform_6(%arg0: i32, %arg1: i32) -> (i32, i32) {
    %c0_i32 = arith.constant 0 : i32
    %c0_i32_0 = arith.constant 0 : i32
    %c0_i32_1 = arith.constant 0 : i32
    return %c0_i32, %c0_i32_0 : i32, i32
  }
  func.func @transform_7(%arg0: i32, %arg1: i32) -> (i32, i32) {
    %c0_i32 = arith.constant 0 : i32
    %c0_i32_0 = arith.constant 0 : i32
    %c0_i32_1 = arith.constant 0 : i32
    return %c0_i32, %c0_i32_0 : i32, i32
  }
  func.func @transform_8(%arg0: i32, %arg1: i32) -> (i32, i32) {
    %c0_i32 = arith.constant 0 : i32
    %c0_i32_0 = arith.constant 0 : i32
    %c0_i32_1 = arith.constant 0 : i32
    return %c0_i32, %c0_i32_0 : i32, i32
  }
  func.func @transform_9(%arg0: i32, %arg1: i32) -> (i32, i32) {
    %c0_i32 = arith.constant 0 : i32
    %c0_i32_0 = arith.constant 0 : i32
    %c0_i32_1 = arith.constant 0 : i32
    return %c0_i32, %c0_i32_0 : i32, i32
  }
  func.func @transform_10(%arg0: i32, %arg1: i32) -> (i32, i32) {
    %c0_i32 = arith.constant 0 : i32
    %c0_i32_0 = arith.constant 0 : i32
    %c0_i32_1 = arith.constant 0 : i32
    return %c0_i32, %c0_i32_0 : i32, i32
  }
  func.func @transform_11(%arg0: i32, %arg1: i32) -> (i32, i32) {
    %c0_i32 = arith.constant 0 : i32
    %c0_i32_0 = arith.constant 0 : i32
    %c0_i32_1 = arith.constant 0 : i32
    return %c0_i32, %c0_i32_0 : i32, i32
  }
}

</mosaic_0001>

<llo_original>
// kernel: tpu_custom_call.1
$region0: #{tpu_custom_call.1}
  #allocation0 [shape = 'u32[]', space=smem, size = 0x4, offset = 0x4, fixed_abs, tag = 'smem constant byte address 0x4 - core index']
  #allocation1 [shape = 'u32[144,128]{1,0:T(1,128)}', space=vmem, size = 0x12000, scoped, tag = 'internal scratch']
  #allocation2 [shape = 'bf16[2,128,128]{2,1,0:T(8,128)(2,1)}', space=vmem, size = 0x10000, scoped, tag = 'scratch operand']
  #allocation3 [shape = 'f32[128,128]{1,0:T(8,128)}', space=vmem, size = 0x10000, scoped, tag = 'scratch operand']
  #allocation4 [shape = 'bf16[128,256]{1,0:T(8,128)(2,1)}', space=vmem, size = 0x10000, scoped, tag = 'scratch operand']
  %s0 = inlined_call_operand.hbm [shape: bf16[128,128], index: 0, kind: input, shape index: {}]
  %s1 = inlined_call_operand.hbm [shape: bf16[128,128], index: 1, kind: input, shape index: {}]
  %s2 = inlined_call_operand.hbm [shape: bf16[4,256,128], index: 2, kind: input, shape index: {}]
  %s3 = inlined_call_operand.vmem [shape: f32[4,1,128], index: 3, kind: input, shape index: {}]
  %s4 = inlined_call_operand.hbm [shape: bf16[8,128], index: 4, kind: input, shape index: {}]
  %s5 = inlined_call_operand.hbm [shape: bf16[128,256], index: 5, kind: input, shape index: {}]
  %s6 = inlined_call_operand.vmem [shape: f32[1,256], index: 6, kind: input, shape index: {}]
  %s7 = inlined_call_operand.hbm [shape: bf16[256,128], index: 7, kind: input, shape index: {}]
  %s8 = inlined_call_operand.vmem [shape: f32[1,128], index: 8, kind: input, shape index: {}]
  %s9 = inlined_call_operand.hbm [shape: bf16[128,128], index: 9, kind: input, shape index: {}]
  %s10 = inlined_call_operand.vmem [shape: f32[1,128], index: 10, kind: input, shape index: {}]
  %s11 = inlined_call_operand.hbm [shape: f32[8,128], index: 11, kind: output, shape index: {}]
  %s12 = sld [smem:[#allocation0]]
  $region121: #{tpu_custom_call.1} parent=0
    _
  %s14 = ssub.s32 1, %s12
  %s15 = scalar_select 0, %s14, %s12
  $region1: #{tpu_custom_call.1} parent=0
    #allocation5 [shape = 'u8[65536]{0}', space=vmem, size = 0x10000, scoped, tag = 'input window, operand 0']
    #allocation6 [shape = 's32[2]{0}', space=sflag, size = 0x8, scoped, tag = 'scoped memory for tpu_custom_call.1']
    #allocation7 [shape = 's32[2]{0}', space=sflag, size = 0x8, scoped, tag = 'scoped memory for tpu_custom_call.1']
    #allocation8 [shape = 'u8[65536]{0}', space=vmem, size = 0x10000, scoped, tag = 'input window, operand 1']
    #allocation9 [shape = 's32[2]{0}', space=sflag, size = 0x8, scoped, tag = 'scoped memory for tpu_custom_call.1']
    #allocation10 [shape = 'u8[131072]{0}', space=vmem, size = 0x20000, scoped, tag = 'input window, operand 2']
    #allocation11 [shape = 'u8[2048]{0}', space=vmem, size = 0x800, scoped, tag = 'input window, operand 4, single buffered']
    #allocation12 [shape = 's32[1]{0}', space=sflag, size = 0x4, scoped, tag = 'scoped memory for tpu_custom_call.1']
    #allocation13 [shape = 'u8[65536]{0}', space=vmem, size = 0x10000, scoped, tag = 'input window, operand 5, single buffered']
    #allocation14 [shape = 'u8[65536]{0}', space=vmem, size = 0x10000, scoped, tag = 'input window, operand 7, single buffered']
    #allocation15 [shape = 's32[1]{0}', space=sflag, size = 0x4, scoped, tag = 'scoped memory for tpu_custom_call.1']
    #allocation16 [shape = 'u8[32768]{0}', space=vmem, size = 0x8000, scoped, tag = 'input window, operand 9, single buffered']
    #allocation17 [shape = 'u8[4096]{0}', space=vmem, size = 0x1000, scoped, tag = 'output window, operand 0, single buffered']
    %16 = vsyncpa [#allocation6], 0
    %s17 = scalar_lea.sflag [#allocation6], 1
    %18 = vsyncpa %s17, 0
    %19 = vsyncpa [#allocation9], 0
    %s20 = scalar_lea.sflag [#allocation9], 1
    %21 = vsyncpa %s20, 0
    %22 = vsyncpa [#allocation12], 0
    %23 = vsyncpa [#allocation15], 0
    %24 = vsyncpa [#allocation7], 0
    loop: start=0, step=1, limit=7
    $region2: #{tpu_custom_call.1} parent=1 // loop_pre_header
      _
    $region3: #{tpu_custom_call.1} parent=1 // loop_header
      %s26 = sphi 0, %s30
      %p27 = scmp.ge.s32.totalorder %s26, 7
      %s33 = sphi 0, %s45
      %s34 = sphi 0, %s41
      %s35 = sphi 0, %s33
      %s36 = sphi 0, %s34
      %s37 = sphi 0, %s35
      %s38 = sphi 0, %s36
      %s52 = sphi 0, %s54
      %s55 = sphi 0, %s52
      %s56 = sphi 0, %s55
      %s72 = sphi 0, %s56
      %s82 = sphi 0, %s84
      %s85 = sphi 0, %s82
      %s86 = sphi 0, %s85
      %s102 = sphi 0, %s86
      %s114 = sphi 0, %s116
      %s117 = sphi 0, %s114
      %s118 = sphi 0, %s117
      %s134 = sphi 0, %s118
      %s146 = sphi 0, %s148
      %s149 = sphi 0, %s146
      %s150 = sphi 0, %s149
      %s166 = sphi 0, %s150
      %s170 = sphi 0, %s170
      %s172 = sphi 0, %s170
      %s173 = sphi 0, %s172
      %s187 = sphi 0, %s173
      %s191 = sphi 0, %s191
      %s193 = sphi 0, %s191
      %s194 = sphi 0, %s193
      %s208 = sphi 0, %s194
      %s212 = sphi 0, %s212
      %s214 = sphi 0, %s212
      %s215 = sphi 0, %s214
      %s229 = sphi 0, %s215
      %s233 = sphi 0, %s233
      %s235 = sphi 0, %s233
      %s236 = sphi 0, %s235
      %s250 = sphi 0, %s236
      %s254 = sphi 0, %s254
      %s256 = sphi 0, %s254
      %s257 = sphi 0, %s256
      %s271 = sphi 0, %s257
      %s275 = sphi 0, %s275
      %s277 = sphi 0, %s275
      %s278 = sphi 0, %s277
      %s292 = sphi 0, %s278
      %s296 = sphi 0, %s296
      %s298 = sphi 0, %s296
      %s299 = sphi 0, %s298
      %s313 = sphi 0, %s299
      %s317 = sphi 0, %s317
      %s319 = sphi 0, %s317
      %s320 = sphi 0, %s319
      %s334 = sphi 0, %s320
    $region4: #{tpu_custom_call.1} parent=1 // loop_header_branch
      %29 = sbr.rel (%p27) target = $region8
    $region5: #{tpu_custom_call.1} parent=1 // loop_body
      %s31 = ssub.s32 %s26, 1
      %s32 = ssub.s32 %s26, 2
      %s39 = sadd.s32 1, %s34
      %p40 = scmp.ge.s32.totalorder %s39, 1
      %s41 = scalar_select %p40, 0, %s39
      %s42 = sadd.s32 1, %s33
      %s43 = scalar_select %p40, %s42, %s33
      %p44 = scmp.ge.s32.totalorder %s43, 5
      %s45 = scalar_select %p44, 0, %s43
      %p46 = scmp.eq.s32.totalorder %s33, 0
      %s47 = scalar_select %p46, 0, %s34
      %p48 = scmp.eq.s32.totalorder %s45, 0
      %s49 = scalar_select %p48, 0, %s41
      %s50 = ssub.s32 %s47, %s49
      %p51 = scmp.eq.s32.totalorder %s50, 0
      %s53 = sadd.s32 %s52, 1
      %s54 = scalar_select %p51, %s52, %s53
      %p57 = pneg %p51
      %p58 = scmp.eq.s32.totalorder %s26, 4
      %p59 = por %p57, %p58
      %p60 = scmp.ne.s32.totalorder %s52, %s55
      %p61 = scmp.eq.s32.totalorder %s26, 0
      %p62 = por %p60, %p61
      %p63 = scmp.ne.s32.totalorder %s52, %s55
      %p64 = scmp.eq.s32.totalorder %s31, 4
      %p65 = por %p63, %p64
      %p66 = scmp.ne.s32.totalorder %s55, %s56
      %p67 = scmp.eq.s32.totalorder %s31, 0
      %p68 = por %p66, %p67
      %p69 = scmp.ne.s32.totalorder %s55, %s56
      %p70 = scmp.eq.s32.totalorder %s32, 4
      %p71 = por %p69, %p70
      %p73 = scmp.ne.s32.totalorder %s56, %s72
      %p74 = scmp.eq.s32.totalorder %s32, 0
      %p75 = por %p73, %p74
      %p76 = scmp.eq.s32.totalorder %s33, 0
      %s77 = scalar_select %p76, %s34, 0
      %p78 = scmp.eq.s32.totalorder %s45, 0
      %s79 = scalar_select %p78, %s41, 0
      %s80 = ssub.s32 %s77, %s79
      %p81 = scmp.eq.s32.totalorder %s80, 0
      %s83 = sadd.s32 %s82, 1
      %s84 = scalar_select %p81, %s82, %s83
      %p87 = pneg %p81
      %p88 = scmp.eq.s32.totalorder %s26, 4
      %p89 = por %p87, %p88
      %p90 = scmp.ne.s32.totalorder %s82, %s85
      %p91 = scmp.eq.s32.totalorder %s26, 0
      %p92 = por %p90, %p91
      %p93 = scmp.ne.s32.totalorder %s82, %s85
      %p94 = scmp.eq.s32.totalorder %s31, 4
      %p95 = por %p93, %p94
      %p96 = scmp.ne.s32.totalorder %s85, %s86
      %p97 = scmp.eq.s32.totalorder %s31, 0
      %p98 = por %p96, %p97
      %p99 = scmp.ne.s32.totalorder %s85, %s86
      %p100 = scmp.eq.s32.totalorder %s32, 4
      %p101 = por %p99, %p100
      %p103 = scmp.ne.s32.totalorder %s86, %s102
      %p104 = scmp.eq.s32.totalorder %s32, 0
      %p105 = por %p103, %p104
      %s106 = ssub.s32 %s33, 1
      %p107 = scmp.gt.s32.totalorder %s106, 0
      %s108 = scalar_select %p107, %s106, 0
      %s109 = ssub.s32 %s45, 1
      %p110 = scmp.gt.s32.totalorder %s109, 0
      %s111 = scalar_select %p110, %s109, 0
      %s112 = ssub.s32 %s108, %s111
      %p113 = scmp.eq.s32.totalorder %s112, 0
      %s115 = sadd.s32 %s114, 1
      %s116 = scalar_select %p113, %s114, %s115
      %p119 = pneg %p113
      %p120 = scmp.eq.s32.totalorder %s26, 4
      %p121 = por %p119, %p120
      %p122 = scmp.ne.s32.totalorder %s114, %s117
      %p123 = scmp.eq.s32.totalorder %s26, 0
      %p124 = por %p122, %p123
      %p125 = scmp.ne.s32.totalorder %s114, %s117
      %p126 = scmp.eq.s32.totalorder %s31, 4
      %p127 = por %p125, %p126
      %p128 = scmp.ne.s32.totalorder %s117, %s118
      %p129 = scmp.eq.s32.totalorder %s31, 0
      %p130 = por %p128, %p129
      %p131 = scmp.ne.s32.totalorder %s117, %s118
      %p132 = scmp.eq.s32.totalorder %s32, 4
      %p133 = por %p131, %p132
      %p135 = scmp.ne.s32.totalorder %s118, %s134
      %p136 = scmp.eq.s32.totalorder %s32, 0
      %p137 = por %p135, %p136
      %s138 = ssub.s32 %s33, 1
      %p139 = scmp.gt.s32.totalorder %s138, 0
      %s140 = scalar_select %p139, %s138, 0
      %s141 = ssub.s32 %s45, 1
      %p142 = scmp.gt.s32.totalorder %s141, 0
      %s143 = scalar_select %p142, %s141, 0
      %s144 = ssub.s32 %s140, %s143
      %p145 = scmp.eq.s32.totalorder %s144, 0
      %s147 = sadd.s32 %s146, 1
      %s148 = scalar_select %p145, %s146, %s147
      %p151 = pneg %p145
      %p152 = scmp.eq.s32.totalorder %s26, 4
      %p153 = por %p151, %p152
      %p154 = scmp.ne.s32.totalorder %s146, %s149
      %p155 = scmp.eq.s32.totalorder %s26, 0
      %p156 = por %p154, %p155
      %p157 = scmp.ne.s32.totalorder %s146, %s149
      %p158 = scmp.eq.s32.totalorder %s31, 4
      %p159 = por %p157, %p158
      %p160 = scmp.ne.s32.totalorder %s149, %s150
      %p161 = scmp.eq.s32.totalorder %s31, 0
      %p162 = por %p160, %p161
      %p163 = scmp.ne.s32.totalorder %s149, %s150
      %p164 = scmp.eq.s32.totalorder %s32, 4
      %p165 = por %p163, %p164
      %p167 = scmp.ne.s32.totalorder %s150, %s166
      %p168 = scmp.eq.s32.totalorder %s32, 0
      %p169 = por %p167, %p168
      %s171 = sadd.s32 %s170, 1
      %p174 = scmp.eq.s32.totalorder %s26, 4
      %p175 = scmp.ne.s32.totalorder %s170, %s172
      %p176 = scmp.eq.s32.totalorder %s26, 0
      %p177 = por %p175, %p176
      %p178 = scmp.ne.s32.totalorder %s170, %s172
      %p179 = scmp.eq.s32.totalorder %s31, 4
      %p180 = por %p178, %p179
      %p181 = scmp.ne.s32.totalorder %s172, %s173
      %p182 = scmp.eq.s32.totalorder %s31, 0
      %p183 = por %p181, %p182
      %p184 = scmp.ne.s32.totalorder %s172, %s173
      %p185 = scmp.eq.s32.totalorder %s32, 4
      %p186 = por %p184, %p185
      %p188 = scmp.ne.s32.totalorder %s173, %s187
      %p189 = scmp.eq.s32.totalorder %s32, 0
      %p190 = por %p188, %p189
      %s192 = sadd.s32 %s191, 1
      %p195 = scmp.eq.s32.totalorder %s26, 4
      %p196 = scmp.ne.s32.totalorder %s191, %s193
      %p197 = scmp.eq.s32.totalorder %s26, 0
      %p198 = por %p196, %p197
      %p199 = scmp.ne.s32.totalorder %s191, %s193
      %p200 = scmp.eq.s32.totalorder %s31, 4
      %p201 = por %p199, %p200
      %p202 = scmp.ne.s32.totalorder %s193, %s194
      %p203 = scmp.eq.s32.totalorder %s31, 0
      %p204 = por %p202, %p203
      %p205 = scmp.ne.s32.totalorder %s193, %s194
      %p206 = scmp.eq.s32.totalorder %s32, 4
      %p207 = por %p205, %p206
      %p209 = scmp.ne.s32.totalorder %s194, %s208
      %p210 = scmp.eq.s32.totalorder %s32, 0
      %p211 = por %p209, %p210
      %s213 = sadd.s32 %s212, 1
      %p216 = scmp.eq.s32.totalorder %s26, 4
      %p217 = scmp.ne.s32.totalorder %s212, %s214
      %p218 = scmp.eq.s32.totalorder %s26, 0
      %p219 = por %p217, %p218
      %p220 = scmp.ne.s32.totalorder %s212, %s214
      %p221 = scmp.eq.s32.totalorder %s31, 4
      %p222 = por %p220, %p221
      %p223 = scmp.ne.s32.totalorder %s214, %s215
      %p224 = scmp.eq.s32.totalorder %s31, 0
      %p225 = por %p223, %p224
      %p226 = scmp.ne.s32.totalorder %s214, %s215
      %p227 = scmp.eq.s32.totalorder %s32, 4
      %p228 = por %p226, %p227
      %p230 = scmp.ne.s32.totalorder %s215, %s229
      %p231 = scmp.eq.s32.totalorder %s32, 0
      %p232 = por %p230, %p231
      %s234 = sadd.s32 %s233, 1
      %p237 = scmp.eq.s32.totalorder %s26, 4
      %p238 = scmp.ne.s32.totalorder %s233, %s235
      %p239 = scmp.eq.s32.totalorder %s26, 0
      %p240 = por %p238, %p239
      %p241 = scmp.ne.s32.totalorder %s233, %s235
      %p242 = scmp.eq.s32.totalorder %s31, 4
      %p243 = por %p241, %p242
      %p244 = scmp.ne.s32.totalorder %s235, %s236
      %p245 = scmp.eq.s32.totalorder %s31, 0
      %p246 = por %p244, %p245
      %p247 = scmp.ne.s32.totalorder %s235, %s236
      %p248 = scmp.eq.s32.totalorder %s32, 4
      %p249 = por %p247, %p248
      %p251 = scmp.ne.s32.totalorder %s236, %s250
      %p252 = scmp.eq.s32.totalorder %s32, 0
      %p253 = por %p251, %p252
      %s255 = sadd.s32 %s254, 1
      %p258 = scmp.eq.s32.totalorder %s26, 4
      %p259 = scmp.ne.s32.totalorder %s254, %s256
      %p260 = scmp.eq.s32.totalorder %s26, 0
      %p261 = por %p259, %p260
      %p262 = scmp.ne.s32.totalorder %s254, %s256
      %p263 = scmp.eq.s32.totalorder %s31, 4
      %p264 = por %p262, %p263
      %p265 = scmp.ne.s32.totalorder %s256, %s257
      %p266 = scmp.eq.s32.totalorder %s31, 0
      %p267 = por %p265, %p266
      %p268 = scmp.ne.s32.totalorder %s256, %s257
      %p269 = scmp.eq.s32.totalorder %s32, 4
      %p270 = por %p268, %p269
      %p272 = scmp.ne.s32.totalorder %s257, %s271
      %p273 = scmp.eq.s32.totalorder %s32, 0
      %p274 = por %p272, %p273
      %s276 = sadd.s32 %s275, 1
      %p279 = scmp.eq.s32.totalorder %s26, 4
      %p280 = scmp.ne.s32.totalorder %s275, %s277
      %p281 = scmp.eq.s32.totalorder %s26, 0
      %p282 = por %p280, %p281
      %p283 = scmp.ne.s32.totalorder %s275, %s277
      %p284 = scmp.eq.s32.totalorder %s31, 4
      %p285 = por %p283, %p284
      %p286 = scmp.ne.s32.totalorder %s277, %s278
      %p287 = scmp.eq.s32.totalorder %s31, 0
      %p288 = por %p286, %p287
      %p289 = scmp.ne.s32.totalorder %s277, %s278
      %p290 = scmp.eq.s32.totalorder %s32, 4
      %p291 = por %p289, %p290
      %p293 = scmp.ne.s32.totalorder %s278, %s292
      %p294 = scmp.eq.s32.totalorder %s32, 0
      %p295 = por %p293, %p294
      %s297 = sadd.s32 %s296, 1
      %p300 = scmp.eq.s32.totalorder %s26, 4
      %p301 = scmp.ne.s32.totalorder %s296, %s298
      %p302 = scmp.eq.s32.totalorder %s26, 0
      %p303 = por %p301, %p302
      %p304 = scmp.ne.s32.totalorder %s296, %s298
      %p305 = scmp.eq.s32.totalorder %s31, 4
      %p306 = por %p304, %p305
      %p307 = scmp.ne.s32.totalorder %s298, %s299
      %p308 = scmp.eq.s32.totalorder %s31, 0
      %p309 = por %p307, %p308
      %p310 = scmp.ne.s32.totalorder %s298, %s299
      %p311 = scmp.eq.s32.totalorder %s32, 4
      %p312 = por %p310, %p311
      %p314 = scmp.ne.s32.totalorder %s299, %s313
      %p315 = scmp.eq.s32.totalorder %s32, 0
      %p316 = por %p314, %p315
      %s318 = sadd.s32 %s317, 1
      %p321 = scmp.eq.s32.totalorder %s26, 4
      %p322 = scmp.ne.s32.totalorder %s317, %s319
      %p323 = scmp.eq.s32.totalorder %s26, 0
      %p324 = por %p322, %p323
      %p325 = scmp.ne.s32.totalorder %s317, %s319
      %p326 = scmp.eq.s32.totalorder %s31, 4
      %p327 = por %p325, %p326
      %p328 = scmp.ne.s32.totalorder %s319, %s320
      %p329 = scmp.eq.s32.totalorder %s31, 0
      %p330 = por %p328, %p329
      %p331 = scmp.ne.s32.totalorder %s319, %s320
      %p332 = scmp.eq.s32.totalorder %s32, 4
      %p333 = por %p331, %p332
      %p335 = scmp.ne.s32.totalorder %s320, %s334
      %p336 = scmp.eq.s32.totalorder %s32, 0
      %p337 = por %p335, %p336
      %p338 = scmp.le.s32.totalorder 1, %s26
      %p339 = scmp.lt.s32.totalorder %s26, 6
      %p340 = pnand %p338, %p339
      %p341 = pneg %p340
      // Predicated region
      $region9: #{tpu_custom_call.1} parent=5 // pred_check
        _
      $region10: #{tpu_custom_call.1} parent=5 // pred_check_branch
        %343 = sbr.rel (%p340) target = $region12
      $region11: #{tpu_custom_call.1} parent=5 // pred_region
        %s344 = ssub.s32 %s26, 1
        // Predicated region
        $region13: #{tpu_custom_call.1} parent=11 // pred_check
          %p345 = pneg %p183
        $region14: #{tpu_custom_call.1} parent=11 // pred_check_branch
          %347 = sbr.rel (%p345) target = $region16
        $region15: #{tpu_custom_call.1} parent=11 // pred_region
          %s349 = ssub.s32 64, 64
          %350 = vsyncadd [#allocation12], %s349
          %s352 = sshll.u32 [#allocation11], 4
          %s353 = int_to_ptr.vmem [resolvable:$true] %s352
          %355 = dma.hbm_to_vmem [thread:$0]  %s4, 64, %s353, [#allocation12]
        $region16: #{tpu_custom_call.1} parent=11 // pred_fallthru
          _
        // Predicated region
        $region17: #{tpu_custom_call.1} parent=11 // pred_check
          %p356 = pneg %p204
        $region18: #{tpu_custom_call.1} parent=11 // pred_check_branch
          %358 = sbr.rel (%p356) target = $region20
        $region19: #{tpu_custom_call.1} parent=11 // pred_region
          %s360 = ssub.s32 2048, 2048
          %361 = vsyncadd [#allocation12], %s360
          %s362 = sshll.u32 [#allocation13], 4
          %s363 = int_to_ptr.vmem [resolvable:$true] %s362
          %368 = dma.hbm_to_vmem [thread:$0]  %s5, 2048, %s363, [#allocation12], 128, 128, 8
        $region20: #{tpu_custom_call.1} parent=11 // pred_fallthru
          _
        // Predicated region
        $region21: #{tpu_custom_call.1} parent=11 // pred_check
          %p369 = pneg %p225
        $region22: #{tpu_custom_call.1} parent=11 // pred_check_branch
          %371 = sbr.rel (%p369) target = $region24
        $region23: #{tpu_custom_call.1} parent=11 // pred_region
          _
        $region24: #{tpu_custom_call.1} parent=11 // pred_fallthru
          _
        // Predicated region
        $region25: #{tpu_custom_call.1} parent=11 // pred_check
          %p372 = pneg %p246
        $region26: #{tpu_custom_call.1} parent=11 // pred_check_branch
          %374 = sbr.rel (%p372) target = $region28
        $region27: #{tpu_custom_call.1} parent=11 // pred_region
          %s376 = ssub.s32 2048, 2048
          %377 = vsyncadd [#allocation15], %s376
          %s378 = sshll.u32 [#allocation14], 4
          %s379 = int_to_ptr.vmem [resolvable:$true] %s378
          %384 = dma.hbm_to_vmem [thread:$0]  %s7, 2048, %s379, [#allocation15], 64, 64, 4
        $region28: #{tpu_custom_call.1} parent=11 // pred_fallthru
          _
        // Predicated region
        $region29: #{tpu_custom_call.1} parent=11 // pred_check
          %p385 = pneg %p267
        $region30: #{tpu_custom_call.1} parent=11 // pred_check_branch
          %387 = sbr.rel (%p385) target = $region32
        $region31: #{tpu_custom_call.1} parent=11 // pred_region
          _
        $region32: #{tpu_custom_call.1} parent=11 // pred_fallthru
          _
        // Predicated region
        $region33: #{tpu_custom_call.1} parent=11 // pred_check
          %p388 = pneg %p288
        $region34: #{tpu_custom_call.1} parent=11 // pred_check_branch
          %390 = sbr.rel (%p388) target = $region36
        $region35: #{tpu_custom_call.1} parent=11 // pred_region
          %s392 = ssub.s32 1024, 1024
          %393 = vsyncadd [#allocation15], %s392
          %s394 = sshll.u32 [#allocation16], 4
          %s395 = int_to_ptr.vmem [resolvable:$true] %s394
          %400 = dma.hbm_to_vmem [thread:$0]  %s9, 1024, %s395, [#allocation15], 64, 64, 4
        $region36: #{tpu_custom_call.1} parent=11 // pred_fallthru
          _
        // Predicated region
        $region37: #{tpu_custom_call.1} parent=11 // pred_check
          %p401 = pneg %p309
        $region38: #{tpu_custom_call.1} parent=11 // pred_check_branch
          %403 = sbr.rel (%p401) target = $region40
        $region39: #{tpu_custom_call.1} parent=11 // pred_region
          _
        $region40: #{tpu_custom_call.1} parent=11 // pred_fallthru
          _
      $region12: #{tpu_custom_call.1} parent=5 // pred_fallthru
        _
      %p404 = scmp.lt.s32.totalorder %s26, 5
      // Predicated region
      $region41: #{tpu_custom_call.1} parent=5 // pred_check
        %p405 = pneg %p404
      $region42: #{tpu_custom_call.1} parent=5 // pred_check_branch
        %407 = sbr.rel (%p405) target = $region44
      $region43: #{tpu_custom_call.1} parent=5 // pred_region
        // Predicated region
        $region45: #{tpu_custom_call.1} parent=43 // pred_check
          %p408 = pneg %p62
        $region46: #{tpu_custom_call.1} parent=43 // pred_check_branch
          %410 = sbr.rel (%p408) target = $region48
        $region47: #{tpu_custom_call.1} parent=43 // pred_region
          %s411 = sand.u32 %s52, 1
          %s412 = scalar_lea.sflag [#allocation6], %s411
          %s413 = sand.u32 %s52, 1
          %s414 = smul.addr %s413, 64
          %s415 = scalar_lea.vmem [#allocation5], %s414
          %p416 = scmp.eq.s32.totalorder %s33, 0
          %s417 = scalar_select %p416, 0, %s34
          %s418 = smul.u32 16, %s417
          %s420 = ssub.s32 1024, 1024
          %421 = vsyncadd %s412, %s420
          %s422 = smul.addr %s418, 64
          %s423 = scalar_lea.hbm %s0, %s422
          %s424 = sshll.u32 %s415, 4
          %s425 = int_to_ptr.vmem [resolvable:$true] %s424
          %430 = dma.hbm_to_vmem [thread:$0]  %s423, 1024, %s425, %s412, 64, 64, 4
        $region48: #{tpu_custom_call.1} parent=43 // pred_fallthru
          _
        // Predicated region
        $region49: #{tpu_custom_call.1} parent=43 // pred_check
          %p431 = pneg %p92
        $region50: #{tpu_custom_call.1} parent=43 // pred_check_branch
          %433 = sbr.rel (%p431) target = $region52
        $region51: #{tpu_custom_call.1} parent=43 // pred_region
          %s434 = sand.u32 %s26, 1
          %s435 = scalar_lea.sflag [#allocation9], %s434
          %s436 = sand.u32 %s82, 1
          %s437 = smul.addr %s436, 64
          %s438 = scalar_lea.vmem [#allocation8], %s437
          %p439 = scmp.eq.s32.totalorder %s33, 0
          %s440 = scalar_select %p439, %s34, 0
          %s441 = smul.u32 16, %s440
          %s443 = ssub.s32 1024, 1024
          %444 = vsyncadd %s435, %s443
          %s445 = smul.addr %s441, 64
          %s446 = scalar_lea.hbm %s1, %s445
          %s447 = sshll.u32 %s438, 4
          %s448 = int_to_ptr.vmem [resolvable:$true] %s447
          %453 = dma.hbm_to_vmem [thread:$0]  %s446, 1024, %s448, %s435, 64, 64, 4
        $region52: #{tpu_custom_call.1} parent=43 // pred_fallthru
          _
        // Predicated region
        $region53: #{tpu_custom_call.1} parent=43 // pred_check
          %p454 = pneg %p124
        $region54: #{tpu_custom_call.1} parent=43 // pred_check_branch
          %456 = sbr.rel (%p454) target = $region56
        $region55: #{tpu_custom_call.1} parent=43 // pred_region
          %s457 = sand.u32 %s26, 1
          %s458 = scalar_lea.sflag [#allocation9], %s457
          %s459 = sand.u32 %s114, 1
          %s460 = smul.addr %s459, 128
          %s461 = scalar_lea.vmem [#allocation10], %s460
          %s462 = ssub.s32 %s33, 1
          %p463 = scmp.gt.s32.totalorder %s462, 0
          %s464 = scalar_select %p463, %s462, 0
          %s466 = ssub.s32 2048, 2048
          %467 = vsyncadd %s458, %s466
          %s468 = smul.addr %s464, 32
          %s469 = smul.addr %s468, 64
          %s470 = scalar_lea.hbm %s2, %s469
          %s471 = sshll.u32 %s461, 4
          %s472 = int_to_ptr.vmem [resolvable:$true] %s471
          %477 = dma.hbm_to_vmem [thread:$0]  %s470, 2048, %s472, %s458, 64, 64, 4
        $region56: #{tpu_custom_call.1} parent=43 // pred_fallthru
          _
        // Predicated region
        $region57: #{tpu_custom_call.1} parent=43 // pred_check
          %p478 = pneg %p156
        $region58: #{tpu_custom_call.1} parent=43 // pred_check_branch
          %480 = sbr.rel (%p478) target = $region60
        $region59: #{tpu_custom_call.1} parent=43 // pred_region
          %s481 = ssub.s32 %s33, 1
          %p482 = scmp.gt.s32.totalorder %s481, 0
          %s483 = scalar_select %p482, %s481, 0
          %p484 = scmp.lt.s32.totalorder %s483, 3
          %s485 = scalar_select %p484, %s483, 3
          %s486 = scalar_lea.vmem %s3, %s485
          %s487 = ssub.s32 %s33, 1
          %p488 = scmp.gt.s32.totalorder %s487, 0
          %s489 = scalar_select %p488, %s487, 0
        $region60: #{tpu_custom_call.1} parent=43 // pred_fallthru
          _
      $region44: #{tpu_custom_call.1} parent=5 // pred_fallthru
        _
      %p490 = scmp.le.s32.totalorder 1, %s26
      %p491 = scmp.lt.s32.totalorder %s26, 6
      %p492 = pnand %p490, %p491
      %p493 = pneg %p492
      // Predicated region
      $region61: #{tpu_custom_call.1} parent=5 // pred_check
        _
      $region62: #{tpu_custom_call.1} parent=5 // pred_check_branch
        %495 = sbr.rel (%p492) target = $region64
      $region63: #{tpu_custom_call.1} parent=5 // pred_region
        %s496 = ssub.s32 %s26, 1
        %s497 = sand.u32 %s55, 1
        %s498 = scalar_lea.sflag [#allocation6], %s497
        %s499 = sand.u32 %s55, 1
        %s500 = smul.addr %s499, 64
        %s501 = scalar_lea.vmem [#allocation5], %s500
        // Predicated region
        $region65: #{tpu_custom_call.1} parent=63 // pred_check
          %p502 = pneg %p68
        $region66: #{tpu_custom_call.1} parent=63 // pred_check_branch
          %504 = sbr.rel (%p502) target = $region68
        $region67: #{tpu_custom_call.1} parent=63 // pred_region
          %505 = dma.done %s498, 1024
        $region68: #{tpu_custom_call.1} parent=63 // pred_fallthru
          _
        %s506 = sand.u32 %s31, 1
        %s507 = scalar_lea.sflag [#allocation9], %s506
        %s508 = sand.u32 %s85, 1
        %s509 = smul.addr %s508, 64
        %s510 = scalar_lea.vmem [#allocation8], %s509
        // Predicated region
        $region69: #{tpu_custom_call.1} parent=63 // pred_check
          %p511 = pneg %p98
        $region70: #{tpu_custom_call.1} parent=63 // pred_check_branch
          %513 = sbr.rel (%p511) target = $region72
        $region71: #{tpu_custom_call.1} parent=63 // pred_region
          %514 = dma.done %s507, 1024
        $region72: #{tpu_custom_call.1} parent=63 // pred_fallthru
          _
        %s515 = sand.u32 %s31, 1
        %s516 = scalar_lea.sflag [#allocation9], %s515
        %s517 = sand.u32 %s117, 1
        %s518 = smul.addr %s517, 128
        %s519 = scalar_lea.vmem [#allocation10], %s518
        // Predicated region
        $region73: #{tpu_custom_call.1} parent=63 // pred_check
          %p520 = pneg %p130
        $region74: #{tpu_custom_call.1} parent=63 // pred_check_branch
          %522 = sbr.rel (%p520) target = $region76
        $region75: #{tpu_custom_call.1} parent=63 // pred_region
          %523 = dma.done %s516, 2048
        $region76: #{tpu_custom_call.1} parent=63 // pred_fallthru
          _
        // Predicated region
        $region77: #{tpu_custom_call.1} parent=63 // pred_check
          %p524 = pneg %p183
        $region78: #{tpu_custom_call.1} parent=63 // pred_check_branch
          %526 = sbr.rel (%p524) target = $region80
        $region79: #{tpu_custom_call.1} parent=63 // pred_region
          %527 = dma.done [#allocation12], 64
        $region80: #{tpu_custom_call.1} parent=63 // pred_fallthru
          _
        // Predicated region
        $region81: #{tpu_custom_call.1} parent=63 // pred_check
          %p528 = pneg %p204
        $region82: #{tpu_custom_call.1} parent=63 // pred_check_branch
          %530 = sbr.rel (%p528) target = $region84
        $region83: #{tpu_custom_call.1} parent=63 // pred_region
          %531 = dma.done [#allocation12], 2048
        $region84: #{tpu_custom_call.1} parent=63 // pred_fallthru
          _
        // Predicated region
        $region85: #{tpu_custom_call.1} parent=63 // pred_check
          %p532 = pneg %p246
        $region86: #{tpu_custom_call.1} parent=63 // pred_check_branch
          %534 = sbr.rel (%p532) target = $region88
        $region87: #{tpu_custom_call.1} parent=63 // pred_region
          %535 = dma.done [#allocation15], 2048
        $region88: #{tpu_custom_call.1} parent=63 // pred_fallthru
          _
        // Predicated region
        $region89: #{tpu_custom_call.1} parent=63 // pred_check
          %p536 = pneg %p288
        $region90: #{tpu_custom_call.1} parent=63 // pred_check_branch
          %538 = sbr.rel (%p536) target = $region92
        $region91: #{tpu_custom_call.1} parent=63 // pred_region
          %539 = dma.done [#allocation15], 1024
        $region92: #{tpu_custom_call.1} parent=63 // pred_fallthru
          _
        %s540 = sand.u32 %s55, 1
        %s541 = scalar_lea.sflag [#allocation6], %s540
        %s542 = sand.u32 %s55, 1
        %s543 = smul.addr %s542, 64
        %s544 = scalar_lea.vmem [#allocation5], %s543
        %p545 = pneg %p68
        %p546 = pneg %p65
        %s547 = sand.u32 %s31, 1
        %s548 = scalar_lea.sflag [#allocation9], %s547
        %s549 = sand.u32 %s85, 1
        %s550 = smul.addr %s549, 64
        %s551 = scalar_lea.vmem [#allocation8], %s550
        %p552 = pneg %p98
        %p553 = pneg %p95
        %s554 = sand.u32 %s31, 1
        %s555 = scalar_lea.sflag [#allocation9], %s554
        %s556 = sand.u32 %s117, 1
        %s557 = smul.addr %s556, 128
        %s558 = scalar_lea.vmem [#allocation10], %s557
        %p559 = pneg %p130
        %p560 = pneg %p127
        %s561 = ssub.s32 %s35, 1
        %p562 = scmp.gt.s32.totalorder %s561, 0
        %s563 = scalar_select %p562, %s561, 0
        %p564 = scmp.lt.s32.totalorder %s563, 3
        %s565 = scalar_select %p564, %s563, 3
        %s566 = scalar_lea.vmem %s3, %s565
        %p567 = pneg %p162
        %p568 = pneg %p159
        %p569 = pneg %p183
        %p570 = pneg %p180
        %p571 = pneg %p204
        %p572 = pneg %p201
        %p573 = pneg %p225
        %p574 = pneg %p222
        %p575 = pneg %p246
        %p576 = pneg %p243
        %p577 = pneg %p267
        %p578 = pneg %p264
        %p579 = pneg %p288
        %p580 = pneg %p285
        %p581 = pneg %p309
        %p582 = pneg %p306
        %p583 = pneg %p330
        %p584 = pneg %p327
        %p585 = scmp.eq.s32.totalorder %s35, 0
        %s586 = scalar_select %p585, 0, %s36
        %s587 = smul.u32 16, %s586
        %p588 = scmp.eq.s32.totalorder %s35, 0
        %s589 = scalar_select %p588, %s36, 0
        %s590 = smul.u32 16, %s589
        %s591 = ssub.s32 %s35, 1
        %p592 = scmp.gt.s32.totalorder %s591, 0
        %s593 = scalar_select %p592, %s591, 0
        %s594 = ssub.s32 %s35, 1
        %p595 = scmp.gt.s32.totalorder %s594, 0
        %s596 = scalar_select %p595, %s594, 0
        %p597 = scmp.lt.s32.totalorder %s596, 3
        %s598 = scalar_select %p597, %s596, 3
        %s599 = scalar_lea.vmem %s3, %s598
        %s600 = ssub.s32 %s35, 1
        %p601 = scmp.gt.s32.totalorder %s600, 0
        %s602 = scalar_select %p601, %s600, 0
        %s604 = smul.u32 %s36, 128
        %p605 = scmp.eq.s32.totalorder %s35, 0
        // Predicated region
        $region93: #{tpu_custom_call.1} parent=63 // pred_check
          %p606 = pneg %p605
        $region94: #{tpu_custom_call.1} parent=63 // pred_check_branch
          %608 = sbr.rel (%p606) target = $region96
        $region95: #{tpu_custom_call.1} parent=63 // pred_region
          %v609 = vld [vmem:[%s510] sm:$0xf]
          %v610 = vld [vmem:[%s510 + $0x4] sm:$0xf]
          %v611 = vld [vmem:[%s510 + $0x8] sm:$0xf]
          %v612 = vld [vmem:[%s510 + $0xc] sm:$0xf]
          %v613 = vld [vmem:[%s510 + $0x10] sm:$0xf]
          %v614 = vld [vmem:[%s510 + $0x14] sm:$0xf]
          %v615 = vld [vmem:[%s510 + $0x18] sm:$0xf]
          %v616 = vld [vmem:[%s510 + $0x1c] sm:$0xf]
          %v617 = vld [vmem:[%s510 + $0x20] sm:$0xf]
          %v618 = vld [vmem:[%s510 + $0x24] sm:$0xf]
          %v619 = vld [vmem:[%s510 + $0x28] sm:$0xf]
          %v620 = vld [vmem:[%s510 + $0x2c] sm:$0xf]
          %v621 = vld [vmem:[%s510 + $0x30] sm:$0xf]
          %v622 = vld [vmem:[%s510 + $0x34] sm:$0xf]
          %v623 = vld [vmem:[%s510 + $0x38] sm:$0xf]
          %v624 = vld [vmem:[%s510 + $0x3c] sm:$0xf]
          %s625 = sshra.s32 %s604, 3
          %s626 = sand.u32 %s604, 7
          %s627 = smul.addr %s625, 4
          %s628 = scalar_lea.vmem [#allocation2], %s627
          %629 = vst [vmem:[%s628] sm:$0xf] %v609
          %630 = vst [vmem:[%s628 + $0x4] sm:$0xf] %v610
          %631 = vst [vmem:[%s628 + $0x8] sm:$0xf] %v611
          %632 = vst [vmem:[%s628 + $0xc] sm:$0xf] %v612
          %633 = vst [vmem:[%s628 + $0x10] sm:$0xf] %v613
          %634 = vst [vmem:[%s628 + $0x14] sm:$0xf] %v614
          %635 = vst [vmem:[%s628 + $0x18] sm:$0xf] %v615
          %636 = vst [vmem:[%s628 + $0x1c] sm:$0xf] %v616
          %637 = vst [vmem:[%s628 + $0x20] sm:$0xf] %v617
          %638 = vst [vmem:[%s628 + $0x24] sm:$0xf] %v618
          %639 = vst [vmem:[%s628 + $0x28] sm:$0xf] %v619
          %640 = vst [vmem:[%s628 + $0x2c] sm:$0xf] %v620
          %641 = vst [vmem:[%s628 + $0x30] sm:$0xf] %v621
          %642 = vst [vmem:[%s628 + $0x34] sm:$0xf] %v622
          %643 = vst [vmem:[%s628 + $0x38] sm:$0xf] %v623
          %644 = vst [vmem:[%s628 + $0x3c] sm:$0xf] %v624
          %v645 = vunpack.c.l.bf16 %v609
          %v646 = vunpack.c.l.bf16 %v610
          %v647 = vunpack.c.l.bf16 %v611
          %v648 = vunpack.c.l.bf16 %v612
          %v649 = vunpack.c.l.bf16 %v613
          %v650 = vunpack.c.l.bf16 %v614
          %v651 = vunpack.c.l.bf16 %v615
          %v652 = vunpack.c.l.bf16 %v616
          %v653 = vunpack.c.l.bf16 %v617
          %v654 = vunpack.c.l.bf16 %v618
          %v655 = vunpack.c.l.bf16 %v619
          %v656 = vunpack.c.l.bf16 %v620
          %v657 = vunpack.c.l.bf16 %v621
          %v658 = vunpack.c.l.bf16 %v622
          %v659 = vunpack.c.l.bf16 %v623
          %v660 = vunpack.c.l.bf16 %v624
          %s661 = scalar_lea.vmem [#allocation3], %s604
          %662 = vst [vmem:[%s661] sm:$0xff] %v645
          %663 = vst [vmem:[%s661 + $0x8] sm:$0xff] %v646
          %664 = vst [vmem:[%s661 + $0x10] sm:$0xff] %v647
          %665 = vst [vmem:[%s661 + $0x18] sm:$0xff] %v648
          %666 = vst [vmem:[%s661 + $0x20] sm:$0xff] %v649
          %667 = vst [vmem:[%s661 + $0x28] sm:$0xff] %v650
          %668 = vst [vmem:[%s661 + $0x30] sm:$0xff] %v651
          %669 = vst [vmem:[%s661 + $0x38] sm:$0xff] %v652
          %670 = vst [vmem:[%s661 + $0x40] sm:$0xff] %v653
          %671 = vst [vmem:[%s661 + $0x48] sm:$0xff] %v654
          %672 = vst [vmem:[%s661 + $0x50] sm:$0xff] %v655
          %673 = vst [vmem:[%s661 + $0x58] sm:$0xff] %v656
          %674 = vst [vmem:[%s661 + $0x60] sm:$0xff] %v657
          %675 = vst [vmem:[%s661 + $0x68] sm:$0xff] %v658
          %676 = vst [vmem:[%s661 + $0x70] sm:$0xff] %v659
          %677 = vst [vmem:[%s661 + $0x78] sm:$0xff] %v660
        $region96: #{tpu_custom_call.1} parent=63 // pred_fallthru
          _
        %p678 = scmp.ge.s32.totalorder %s35, 1
        // Predicated region
        $region97: #{tpu_custom_call.1} parent=63 // pred_check
          %p679 = pneg %p678
        $region98: #{tpu_custom_call.1} parent=63 // pred_check_branch
          %681 = sbr.rel (%p679) target = $region100
        $region99: #{tpu_custom_call.1} parent=63 // pred_region
          %s682 = sadd.s32 %s35, 1
          %p683 = scmp.lt.s32.totalorder %s682, 0
          %s684 = ssub.s32 0, %s682
          %s685 = scalar_select %p683, %s684, %s682
          %s686 = sand.u32 %s685, 1
          %s687 = ssub.s32 0, %s686
          %s688 = scalar_select %p683, %s687, %s686
          %p689 = scmp.ne.s32.totalorder %s688, 0
          %p690 = scmp.lt.s32.totalorder %s688, 0
          %p691 = pnand %p690, %p689
          %p692 = pneg %p691
          %s693 = sadd.s32 %s688, 2
          %s694 = scalar_select %p692, %s693, %s688
          %p695 = scmp.lt.s32.totalorder %s35, 0
          %s696 = ssub.s32 0, %s35
          %s697 = scalar_select %p695, %s696, %s35
          %s698 = sand.u32 %s697, 1
          %s699 = ssub.s32 0, %s698
          %s700 = scalar_select %p695, %s699, %s698
          %p701 = scmp.ne.s32.totalorder %s700, 0
          %p702 = scmp.lt.s32.totalorder %s700, 0
          %p703 = pnand %p702, %p701
          %p704 = pneg %p703
          %s705 = sadd.s32 %s700, 2
          %s706 = scalar_select %p704, %s705, %s700
          %v707 = vld [vmem:[%s501] sm:$0xf]
          %v708 = vld [vmem:[%s501 + $0x4] sm:$0xf]
          %v709 = vld [vmem:[%s501 + $0x8] sm:$0xf]
          %v710 = vld [vmem:[%s501 + $0xc] sm:$0xf]
          %v711 = vld [vmem:[%s501 + $0x10] sm:$0xf]
          %v712 = vld [vmem:[%s501 + $0x14] sm:$0xf]
          %v713 = vld [vmem:[%s501 + $0x18] sm:$0xf]
          %v714 = vld [vmem:[%s501 + $0x1c] sm:$0xf]
          %v715 = vld [vmem:[%s501 + $0x20] sm:$0xf]
          %v716 = vld [vmem:[%s501 + $0x24] sm:$0xf]
          %v717 = vld [vmem:[%s501 + $0x28] sm:$0xf]
          %v718 = vld [vmem:[%s501 + $0x2c] sm:$0xf]
          %v719 = vld [vmem:[%s501 + $0x30] sm:$0xf]
          %v720 = vld [vmem:[%s501 + $0x34] sm:$0xf]
          %v721 = vld [vmem:[%s501 + $0x38] sm:$0xf]
          %v722 = vld [vmem:[%s501 + $0x3c] sm:$0xf]
          %s723 = smul.u32 %s694, 16
          %s724 = smul.addr %s723, 4
          %s725 = scalar_lea.vmem [#allocation2], %s724
          %v726 = vld [vmem:[%s725] sm:$0xf]
          %v727 = vld [vmem:[%s725 + $0x4] sm:$0xf]
          %v728 = vld [vmem:[%s725 + $0x8] sm:$0xf]
          %v729 = vld [vmem:[%s725 + $0xc] sm:$0xf]
          %v730 = vld [vmem:[%s725 + $0x10] sm:$0xf]
          %v731 = vld [vmem:[%s725 + $0x14] sm:$0xf]
          %v732 = vld [vmem:[%s725 + $0x18] sm:$0xf]
          %v733 = vld [vmem:[%s725 + $0x1c] sm:$0xf]
          %v734 = vld [vmem:[%s725 + $0x20] sm:$0xf]
          %v735 = vld [vmem:[%s725 + $0x24] sm:$0xf]
          %v736 = vld [vmem:[%s725 + $0x28] sm:$0xf]
          %v737 = vld [vmem:[%s725 + $0x2c] sm:$0xf]
          %v738 = vld [vmem:[%s725 + $0x30] sm:$0xf]
          %v739 = vld [vmem:[%s725 + $0x34] sm:$0xf]
          %v740 = vld [vmem:[%s725 + $0x38] sm:$0xf]
          %v741 = vld [vmem:[%s725 + $0x3c] sm:$0xf]
          %s742 = sshra.s32 %s604, 3
          %s743 = sand.u32 %s604, 7
          %s744 = sadd.s32 %s742, %s723
          %s745 = smul.addr %s744, 4
          %s746 = scalar_lea.vmem [#allocation2], %s745
          %v747 = vld [vmem:[%s746] sm:$0xf]
          %v748 = vld [vmem:[%s746 + $0x4] sm:$0xf]
          %v749 = vld [vmem:[%s746 + $0x8] sm:$0xf]
          %v750 = vld [vmem:[%s746 + $0xc] sm:$0xf]
          %v751 = vld [vmem:[%s746 + $0x10] sm:$0xf]
          %v752 = vld [vmem:[%s746 + $0x14] sm:$0xf]
          %v753 = vld [vmem:[%s746 + $0x18] sm:$0xf]
          %v754 = vld [vmem:[%s746 + $0x1c] sm:$0xf]
          %v755 = vld [vmem:[%s746 + $0x20] sm:$0xf]
          %v756 = vld [vmem:[%s746 + $0x24] sm:$0xf]
          %v757 = vld [vmem:[%s746 + $0x28] sm:$0xf]
          %v758 = vld [vmem:[%s746 + $0x2c] sm:$0xf]
          %v759 = vld [vmem:[%s746 + $0x30] sm:$0xf]
          %v760 = vld [vmem:[%s746 + $0x34] sm:$0xf]
          %v761 = vld [vmem:[%s746 + $0x38] sm:$0xf]
          %v762 = vld [vmem:[%s746 + $0x3c] sm:$0xf]
          %v779 = vunpack.c.l.b16 %v707
          %v780 = vunpack.c.l.b16 %v708
          %v781 = vunpack.c.l.b16 %v709
          %v782 = vunpack.c.l.b16 %v710
          %v783 = vunpack.c.l.b16 %v711
          %v784 = vunpack.c.l.b16 %v712
          %v785 = vunpack.c.l.b16 %v713
          %v786 = vunpack.c.l.b16 %v714
          %v787 = vunpack.c.l.b16 %v715
          %v788 = vunpack.c.l.b16 %v716
          %v789 = vunpack.c.l.b16 %v717
          %v790 = vunpack.c.l.b16 %v718
          %v791 = vunpack.c.l.b16 %v719
          %v792 = vunpack.c.l.b16 %v720
          %v793 = vunpack.c.l.b16 %v721
          %v794 = vunpack.c.l.b16 %v722
          %v795 = vpack.c.b16 %v780, %v779
          %v796 = vpack.c.b16 %v782, %v781
          %v797 = vpack.c.b16 %v784, %v783
          %v798 = vpack.c.b16 %v786, %v785
          %v799 = vpack.c.b16 %v788, %v787
          %v800 = vpack.c.b16 %v790, %v789
          %v801 = vpack.c.b16 %v792, %v791
          %v802 = vpack.c.b16 %v794, %v793
          %v827 = vunpack.c.l.b16 %v726
          %v828 = vunpack.c.l.b16 %v727
          %v829 = vunpack.c.l.b16 %v728
          %v830 = vunpack.c.l.b16 %v729
          %v831 = vunpack.c.l.b16 %v730
          %v832 = vunpack.c.l.b16 %v731
          %v833 = vunpack.c.l.b16 %v732
          %v834 = vunpack.c.l.b16 %v733
          %v835 = vunpack.c.l.b16 %v734
          %v836 = vunpack.c.l.b16 %v735
          %v837 = vunpack.c.l.b16 %v736
          %v838 = vunpack.c.l.b16 %v737
          %v839 = vunpack.c.l.b16 %v738
          %v840 = vunpack.c.l.b16 %v739
          %v841 = vunpack.c.l.b16 %v740
          %v842 = vunpack.c.l.b16 %v741
          %v843 = vpack.c.b16 %v828, %v827
          %v844 = vpack.c.b16 %v830, %v829
          %v845 = vpack.c.b16 %v832, %v831
          %v846 = vpack.c.b16 %v834, %v833
          %v847 = vpack.c.b16 %v836, %v835
          %v848 = vpack.c.b16 %v838, %v837
          %v849 = vpack.c.b16 %v840, %v839
          %v850 = vpack.c.b16 %v842, %v841
          %859 = vmatprep.subr.bf16.mxu0 0
          %860 = vmatpush1.bf16.msra.mxu0 %v850
          %861 = vmatprep.subr.bf16.mxu0 0
          %862 = vmatpush1.bf16.msra.mxu0 %v849
          %863 = vmatprep.subr.bf16.mxu0 0
          %864 = vmatpush1.bf16.msra.mxu0 %v848
          %865 = vmatprep.subr.bf16.mxu0 0
          %866 = vmatpush1.bf16.msra.mxu0 %v847
          %867 = vmatprep.subr.bf16.mxu0 0
          %868 = vmatpush1.bf16.msra.mxu0 %v846
          %869 = vmatprep.subr.bf16.mxu0 0
          %870 = vmatpush1.bf16.msra.mxu0 %v845
          %871 = vmatprep.subr.bf16.mxu0 0
          %872 = vmatpush1.bf16.msra.mxu0 %v844
          %873 = vmatprep.subr.bf16.mxu0 0
          %874 = vmatpush1.bf16.msra.mxu0 %v843
          %875 = vmatprep.subr.bf16.mxu0 0
          %876 = vmatpush2.bf16.msra.mxu0 0
          %877 = vmatprep.subr.bf16.mxu0 0
          %878 = vmatpush2.bf16.msra.mxu0 0
          %879 = vmatprep.subr.bf16.mxu0 0
          %880 = vmatpush2.bf16.msra.mxu0 0
          %881 = vmatprep.subr.bf16.mxu0 0
          %882 = vmatpush2.bf16.msra.mxu0 0
          %883 = vmatprep.subr.bf16.mxu0 0
          %884 = vmatpush2.bf16.msra.mxu0 0
          %885 = vmatprep.subr.bf16.mxu0 0
          %886 = vmatpush2.bf16.msra.mxu0 0
          %887 = vmatprep.subr.bf16.mxu0 0
          %888 = vmatpush2.bf16.msra.mxu0 0
          %889 = vmatprep.subr.bf16.mxu0 0
          %890 = vmatpush2.bf16.msra.mxu0 0
          %891 = vmatprep.mubr.bf16.mxu0 0
          %892 = vmatmul.mubr.bf16.gmra.mxu0 %v795
          %v893 = vpop.f32.mrf.mxu0
          %v894 = vadd.f32 0.0, %v893
          %v895 = vpop.f32.mrf.mxu0
          %v896 = vpop.f32.mrf.mxu0
          %v897 = vadd.f32 0.0, %v896
          %v898 = vpop.f32.mrf.mxu0
          %899 = vmatprep.mubr.bf16.mxu0 0
          %900 = vmatmul.mubr.bf16.gmra.mxu0 %v796
          %v901 = vpop.f32.mrf.mxu0
          %v902 = vadd.f32 0.0, %v901
          %v903 = vpop.f32.mrf.mxu0
          %v904 = vpop.f32.mrf.mxu0
          %v905 = vadd.f32 0.0, %v904
          %v906 = vpop.f32.mrf.mxu0
          %907 = vmatprep.mubr.bf16.mxu0 0
          %908 = vmatmul.mubr.bf16.gmra.mxu0 %v797
          %v909 = vpop.f32.mrf.mxu0
          %v910 = vadd.f32 0.0, %v909
          %v911 = vpop.f32.mrf.mxu0
          %v912 = vpop.f32.mrf.mxu0
          %v913 = vadd.f32 0.0, %v912
          %v914 = vpop.f32.mrf.mxu0
          %915 = vmatprep.mubr.bf16.mxu0 0
          %916 = vmatmul.mubr.bf16.gmra.mxu0 %v798
          %v917 = vpop.f32.mrf.mxu0
          %v918 = vadd.f32 0.0, %v917
          %v919 = vpop.f32.mrf.mxu0
          %v920 = vpop.f32.mrf.mxu0
          %v921 = vadd.f32 0.0, %v920
          %v922 = vpop.f32.mrf.mxu0
          %923 = vmatprep.mubr.bf16.mxu0 0
          %924 = vmatmul.mubr.bf16.gmra.mxu0 %v799
          %v925 = vpop.f32.mrf.mxu0
          %v926 = vadd.f32 0.0, %v925
          %v927 = vpop.f32.mrf.mxu0
          %v928 = vpop.f32.mrf.mxu0
          %v929 = vadd.f32 0.0, %v928
          %v930 = vpop.f32.mrf.mxu0
          %931 = vmatprep.mubr.bf16.mxu0 0
          %932 = vmatmul.mubr.bf16.gmra.mxu0 %v800
          %v933 = vpop.f32.mrf.mxu0
          %v934 = vadd.f32 0.0, %v933
          %v935 = vpop.f32.mrf.mxu0
          %v936 = vpop.f32.mrf.mxu0
          %v937 = vadd.f32 0.0, %v936
          %v938 = vpop.f32.mrf.mxu0
          %939 = vmatprep.mubr.bf16.mxu0 0
          %940 = vmatmul.mubr.bf16.gmra.mxu0 %v801
          %v941 = vpop.f32.mrf.mxu0
          %v942 = vadd.f32 0.0, %v941
          %v943 = vpop.f32.mrf.mxu0
          %v944 = vpop.f32.mrf.mxu0
          %v945 = vadd.f32 0.0, %v944
          %v946 = vpop.f32.mrf.mxu0
          %947 = vmatprep.mubr.bf16.mxu0 0
          %948 = vmatmul.mubr.bf16.gmra.mxu0 %v802
          %v949 = vpop.f32.mrf.mxu0
          %v950 = vadd.f32 0.0, %v949
          %v951 = vpop.f32.mrf.mxu0
          %v952 = vpop.f32.mrf.mxu0
          %v953 = vadd.f32 0.0, %v952
          %v954 = vpop.f32.mrf.mxu0
          %955 = vdwg.mxu0
          %v956 = vpack.c.bf16 %v897, %v894
          %v957 = vpack.c.bf16 %v905, %v902
          %v958 = vpack.c.bf16 %v913, %v910
          %v959 = vpack.c.bf16 %v921, %v918
          %v960 = vpack.c.bf16 %v929, %v926
          %v961 = vpack.c.bf16 %v937, %v934
          %v962 = vpack.c.bf16 %v945, %v942
          %v963 = vpack.c.bf16 %v953, %v950
          %v972 = vunpack.c.l.b16 %v956
          %v973 = vunpack.c.h.b16 %v956
          %v974 = vunpack.c.l.b16 %v957
          %v975 = vunpack.c.h.b16 %v957
          %v976 = vunpack.c.l.b16 %v958
          %v977 = vunpack.c.h.b16 %v958
          %v978 = vunpack.c.l.b16 %v959
          %v979 = vunpack.c.h.b16 %v959
          %v980 = vunpack.c.l.b16 %v960
          %v981 = vunpack.c.h.b16 %v960
          %v982 = vunpack.c.l.b16 %v961
          %v983 = vunpack.c.h.b16 %v961
          %v984 = vunpack.c.l.b16 %v962
          %v985 = vunpack.c.h.b16 %v962
          %v986 = vunpack.c.l.b16 %v963
          %v987 = vunpack.c.h.b16 %v963
          %v988 = vpack.c.b16 %v972, %v972
          %v989 = vpack.c.b16 %v973, %v973
          %v990 = vpack.c.b16 %v974, %v974
          %v991 = vpack.c.b16 %v975, %v975
          %v992 = vpack.c.b16 %v976, %v976
          %v993 = vpack.c.b16 %v977, %v977
          %v994 = vpack.c.b16 %v978, %v978
          %v995 = vpack.c.b16 %v979, %v979
          %v996 = vpack.c.b16 %v980, %v980
          %v997 = vpack.c.b16 %v981, %v981
          %v998 = vpack.c.b16 %v982, %v982
          %v999 = vpack.c.b16 %v983, %v983
          %v1000 = vpack.c.b16 %v984, %v984
          %v1001 = vpack.c.b16 %v985, %v985
          %v1002 = vpack.c.b16 %v986, %v986
          %v1003 = vpack.c.b16 %v987, %v987
          %1020 = vst [vmem:[#allocation4] sm:$0xf] %v988
          %1021 = vst [vmem:[#allocation4 + $0x8] sm:$0xf] %v989
          %1022 = vst [vmem:[#allocation4 + $0x10] sm:$0xf] %v990
          %1023 = vst [vmem:[#allocation4 + $0x18] sm:$0xf] %v991
          %1024 = vst [vmem:[#allocation4 + $0x20] sm:$0xf] %v992
          %1025 = vst [vmem:[#allocation4 + $0x28] sm:$0xf] %v993
          %1026 = vst [vmem:[#allocation4 + $0x30] sm:$0xf] %v994
          %1027 = vst [vmem:[#allocation4 + $0x38] sm:$0xf] %v995
          %1028 = vst [vmem:[#allocation4 + $0x40] sm:$0xf] %v996
          %1029 = vst [vmem:[#allocation4 + $0x48] sm:$0xf] %v997
          %1030 = vst [vmem:[#allocation4 + $0x50] sm:$0xf] %v998
          %1031 = vst [vmem:[#allocation4 + $0x58] sm:$0xf] %v999
          %1032 = vst [vmem:[#allocation4 + $0x60] sm:$0xf] %v1000
          %1033 = vst [vmem:[#allocation4 + $0x68] sm:$0xf] %v1001
          %1034 = vst [vmem:[#allocation4 + $0x70] sm:$0xf] %v1002
          %1035 = vst [vmem:[#allocation4 + $0x78] sm:$0xf] %v1003
          %1036 = vst [vmem:[#allocation4 + $0x4] sm:$0xf] %v747
          %1037 = vst [vmem:[#allocation4 + $0xc] sm:$0xf] %v748
          %1038 = vst [vmem:[#allocation4 + $0x14] sm:$0xf] %v749
          %1039 = vst [vmem:[#allocation4 + $0x1c] sm:$0xf] %v750
          %1040 = vst [vmem:[#allocation4 + $0x24] sm:$0xf] %v751
          %1041 = vst [vmem:[#allocation4 + $0x2c] sm:$0xf] %v752
          %1042 = vst [vmem:[#allocation4 + $0x34] sm:$0xf] %v753
          %1043 = vst [vmem:[#allocation4 + $0x3c] sm:$0xf] %v754
          %1044 = vst [vmem:[#allocation4 + $0x44] sm:$0xf] %v755
          %1045 = vst [vmem:[#allocation4 + $0x4c] sm:$0xf] %v756
          %1046 = vst [vmem:[#allocation4 + $0x54] sm:$0xf] %v757
          %1047 = vst [vmem:[#allocation4 + $0x5c] sm:$0xf] %v758
          %1048 = vst [vmem:[#allocation4 + $0x64] sm:$0xf] %v759
          %1049 = vst [vmem:[#allocation4 + $0x6c] sm:$0xf] %v760
          %1050 = vst [vmem:[#allocation4 + $0x74] sm:$0xf] %v761
          %1051 = vst [vmem:[#allocation4 + $0x7c] sm:$0xf] %v762
          %v1052 = vld [vmem:[#allocation4] sm:$0xff]
          %v1053 = vld [vmem:[#allocation4 + $0x8] sm:$0xff]
          %v1054 = vld [vmem:[#allocation4 + $0x10] sm:$0xff]
          %v1055 = vld [vmem:[#allocation4 + $0x18] sm:$0xff]
          %v1056 = vld [vmem:[#allocation4 + $0x20] sm:$0xff]
          %v1057 = vld [vmem:[#allocation4 + $0x28] sm:$0xff]
          %v1058 = vld [vmem:[#allocation4 + $0x30] sm:$0xff]
          %v1059 = vld [vmem:[#allocation4 + $0x38] sm:$0xff]
          %v1060 = vld [vmem:[#allocation4 + $0x40] sm:$0xff]
          %v1061 = vld [vmem:[#allocation4 + $0x48] sm:$0xff]
          %v1062 = vld [vmem:[#allocation4 + $0x50] sm:$0xff]
          %v1063 = vld [vmem:[#allocation4 + $0x58] sm:$0xff]
          %v1064 = vld [vmem:[#allocation4 + $0x60] sm:$0xff]
          %v1065 = vld [vmem:[#allocation4 + $0x68] sm:$0xff]
          %v1066 = vld [vmem:[#allocation4 + $0x70] sm:$0xff]
          %v1067 = vld [vmem:[#allocation4 + $0x78] sm:$0xff]
          %v1068 = vld [vmem:[%s519] sm:$0xf]
          %v1069 = vld [vmem:[%s519 + $0x4] sm:$0xf]
          %v1070 = vld [vmem:[%s519 + $0x8] sm:$0xf]
          %v1071 = vld [vmem:[%s519 + $0xc] sm:$0xf]
          %v1072 = vld [vmem:[%s519 + $0x10] sm:$0xf]
          %v1073 = vld [vmem:[%s519 + $0x14] sm:$0xf]
          %v1074 = vld [vmem:[%s519 + $0x18] sm:$0xf]
          %v1075 = vld [vmem:[%s519 + $0x1c] sm:$0xf]
          %v1076 = vld [vmem:[%s519 + $0x20] sm:$0xf]
          %v1077 = vld [vmem:[%s519 + $0x24] sm:$0xf]
          %v1078 = vld [vmem:[%s519 + $0x28] sm:$0xf]
          %v1079 = vld [vmem:[%s519 + $0x2c] sm:$0xf]
          %v1080 = vld [vmem:[%s519 + $0x30] sm:$0xf]
          %v1081 = vld [vmem:[%s519 + $0x34] sm:$0xf]
          %v1082 = vld [vmem:[%s519 + $0x38] sm:$0xf]
          %v1083 = vld [vmem:[%s519 + $0x3c] sm:$0xf]
          %v1084 = vld [vmem:[%s519 + $0x40] sm:$0xf]
          %v1085 = vld [vmem:[%s519 + $0x44] sm:$0xf]
          %v1086 = vld [vmem:[%s519 + $0x48] sm:$0xf]
          %v1087 = vld [vmem:[%s519 + $0x4c] sm:$0xf]
          %v1088 = vld [vmem:[%s519 + $0x50] sm:$0xf]
          %v1089 = vld [vmem:[%s519 + $0x54] sm:$0xf]
          %v1090 = vld [vmem:[%s519 + $0x58] sm:$0xf]
          %v1091 = vld [vmem:[%s519 + $0x5c] sm:$0xf]
          %v1092 = vld [vmem:[%s519 + $0x60] sm:$0xf]
          %v1093 = vld [vmem:[%s519 + $0x64] sm:$0xf]
          %v1094 = vld [vmem:[%s519 + $0x68] sm:$0xf]
          %v1095 = vld [vmem:[%s519 + $0x6c] sm:$0xf]
          %v1096 = vld [vmem:[%s519 + $0x70] sm:$0xf]
          %v1097 = vld [vmem:[%s519 + $0x74] sm:$0xf]
          %v1098 = vld [vmem:[%s519 + $0x78] sm:$0xf]
          %v1099 = vld [vmem:[%s519 + $0x7c] sm:$0xf]
          %v1100 = vld [vmem:[%s599] sm:$0x1]
          %v1102 = vlaneseq
          %v1103 = vshrl.u32 %v1102, 7
          %v1104 = vsub.s32 0, %v1103
          %v1105 = vrot.slane %v1100, %v1104
          %v1123 = vunpack.c.l.b16 %v1052
          %v1124 = vunpack.c.h.b16 %v1052
          %v1125 = vunpack.c.l.b16 %v1053
          %v1126 = vunpack.c.h.b16 %v1053
          %v1127 = vunpack.c.l.b16 %v1054
          %v1128 = vunpack.c.h.b16 %v1054
          %v1129 = vunpack.c.l.b16 %v1055
          %v1130 = vunpack.c.h.b16 %v1055
          %v1131 = vunpack.c.l.b16 %v1056
          %v1132 = vunpack.c.h.b16 %v1056
          %v1133 = vunpack.c.l.b16 %v1057
          %v1134 = vunpack.c.h.b16 %v1057
          %v1135 = vunpack.c.l.b16 %v1058
          %v1136 = vunpack.c.h.b16 %v1058
          %v1137 = vunpack.c.l.b16 %v1059
          %v1138 = vunpack.c.h.b16 %v1059
          %v1139 = vunpack.c.l.b16 %v1060
          %v1140 = vunpack.c.h.b16 %v1060
          %v1141 = vunpack.c.l.b16 %v1061
          %v1142 = vunpack.c.h.b16 %v1061
          %v1143 = vunpack.c.l.b16 %v1062
          %v1144 = vunpack.c.h.b16 %v1062
          %v1145 = vunpack.c.l.b16 %v1063
          %v1146 = vunpack.c.h.b16 %v1063
          %v1147 = vunpack.c.l.b16 %v1064
          %v1148 = vunpack.c.h.b16 %v1064
          %v1149 = vunpack.c.l.b16 %v1065
          %v1150 = vunpack.c.h.b16 %v1065
          %v1151 = vunpack.c.l.b16 %v1066
          %v1152 = vunpack.c.h.b16 %v1066
          %v1153 = vunpack.c.l.b16 %v1067
          %v1154 = vunpack.c.h.b16 %v1067
          %v1155 = vpack.c.b16 %v1125, %v1123
          %v1156 = vpack.c.b16 %v1126, %v1124
          %v1157 = vpack.c.b16 %v1129, %v1127
          %v1158 = vpack.c.b16 %v1130, %v1128
          %v1159 = vpack.c.b16 %v1133, %v1131
          %v1160 = vpack.c.b16 %v1134, %v1132
          %v1161 = vpack.c.b16 %v1137, %v1135
          %v1162 = vpack.c.b16 %v1138, %v1136
          %v1163 = vpack.c.b16 %v1141, %v1139
          %v1164 = vpack.c.b16 %v1142, %v1140
          %v1165 = vpack.c.b16 %v1145, %v1143
          %v1166 = vpack.c.b16 %v1146, %v1144
          %v1167 = vpack.c.b16 %v1149, %v1147
          %v1168 = vpack.c.b16 %v1150, %v1148
          %v1169 = vpack.c.b16 %v1153, %v1151
          %v1170 = vpack.c.b16 %v1154, %v1152
          %v1219 = vunpack.c.l.b16 %v1068
          %v1220 = vunpack.c.l.b16 %v1069
          %v1221 = vunpack.c.l.b16 %v1070
          %v1222 = vunpack.c.l.b16 %v1071
          %v1223 = vunpack.c.l.b16 %v1072
          %v1224 = vunpack.c.l.b16 %v1073
          %v1225 = vunpack.c.l.b16 %v1074
          %v1226 = vunpack.c.l.b16 %v1075
          %v1227 = vunpack.c.l.b16 %v1076
          %v1228 = vunpack.c.l.b16 %v1077
          %v1229 = vunpack.c.l.b16 %v1078
          %v1230 = vunpack.c.l.b16 %v1079
          %v1231 = vunpack.c.l.b16 %v1080
          %v1232 = vunpack.c.l.b16 %v1081
          %v1233 = vunpack.c.l.b16 %v1082
          %v1234 = vunpack.c.l.b16 %v1083
          %v1235 = vunpack.c.l.b16 %v1084
          %v1236 = vunpack.c.l.b16 %v1085
          %v1237 = vunpack.c.l.b16 %v1086
          %v1238 = vunpack.c.l.b16 %v1087
          %v1239 = vunpack.c.l.b16 %v1088
          %v1240 = vunpack.c.l.b16 %v1089
          %v1241 = vunpack.c.l.b16 %v1090
          %v1242 = vunpack.c.l.b16 %v1091
          %v1243 = vunpack.c.l.b16 %v1092
          %v1244 = vunpack.c.l.b16 %v1093
          %v1245 = vunpack.c.l.b16 %v1094
          %v1246 = vunpack.c.l.b16 %v1095
          %v1247 = vunpack.c.l.b16 %v1096
          %v1248 = vunpack.c.l.b16 %v1097
          %v1249 = vunpack.c.l.b16 %v1098
          %v1250 = vunpack.c.l.b16 %v1099
          %v1251 = vpack.c.b16 %v1220, %v1219
          %v1252 = vpack.c.b16 %v1222, %v1221
          %v1253 = vpack.c.b16 %v1224, %v1223
          %v1254 = vpack.c.b16 %v1226, %v1225
          %v1255 = vpack.c.b16 %v1228, %v1227
          %v1256 = vpack.c.b16 %v1230, %v1229
          %v1257 = vpack.c.b16 %v1232, %v1231
          %v1258 = vpack.c.b16 %v1234, %v1233
          %v1259 = vpack.c.b16 %v1236, %v1235
          %v1260 = vpack.c.b16 %v1238, %v1237
          %v1261 = vpack.c.b16 %v1240, %v1239
          %v1262 = vpack.c.b16 %v1242, %v1241
          %v1263 = vpack.c.b16 %v1244, %v1243
          %v1264 = vpack.c.b16 %v1246, %v1245
          %v1265 = vpack.c.b16 %v1248, %v1247
          %v1266 = vpack.c.b16 %v1250, %v1249
          %1283 = vmatprep.subr.bf16.mxu0 0
          %1284 = vmatpush1.bf16.msra.mxu0 %v1258
          %1285 = vmatprep.subr.bf16.mxu0 0
          %1286 = vmatpush1.bf16.msra.mxu0 %v1257
          %1287 = vmatprep.subr.bf16.mxu0 0
          %1288 = vmatpush1.bf16.msra.mxu0 %v1256
          %1289 = vmatprep.subr.bf16.mxu0 0
          %1290 = vmatpush1.bf16.msra.mxu0 %v1255
          %1291 = vmatprep.subr.bf16.mxu0 0
          %1292 = vmatpush1.bf16.msra.mxu0 %v1254
          %1293 = vmatprep.subr.bf16.mxu0 0
          %1294 = vmatpush1.bf16.msra.mxu0 %v1253
          %1295 = vmatprep.subr.bf16.mxu0 0
          %1296 = vmatpush1.bf16.msra.mxu0 %v1252
          %1297 = vmatprep.subr.bf16.mxu0 0
          %1298 = vmatpush1.bf16.msra.mxu0 %v1251
          %1299 = vmatprep.subr.bf16.mxu0 0
          %1300 = vmatpush2.bf16.msra.mxu0 %v1266
          %1301 = vmatprep.subr.bf16.mxu0 0
          %1302 = vmatpush2.bf16.msra.mxu0 %v1265
          %1303 = vmatprep.subr.bf16.mxu0 0
          %1304 = vmatpush2.bf16.msra.mxu0 %v1264
          %1305 = vmatprep.subr.bf16.mxu0 0
          %1306 = vmatpush2.bf16.msra.mxu0 %v1263
          %1307 = vmatprep.subr.bf16.mxu0 0
          %1308 = vmatpush2.bf16.msra.mxu0 %v1262
          %1309 = vmatprep.subr.bf16.mxu0 0
          %1310 = vmatpush2.bf16.msra.mxu0 %v1261
          %1311 = vmatprep.subr.bf16.mxu0 0
          %1312 = vmatpush2.bf16.msra.mxu0 %v1260
          %1313 = vmatprep.subr.bf16.mxu0 0
          %1314 = vmatpush2.bf16.msra.mxu0 %v1259
          %1315 = vmatprep.mubr.bf16.mxu0 %v1156
          %1316 = vmatmul.mubr.bf16.gmra.mxu0 %v1155
          %v1317 = vpop.f32.mrf.mxu0
          %v1318 = vadd.f32 %v1105, %v1317
          %v1319 = vpop.f32.mrf.mxu0
          %v1320 = vpop.f32.mrf.mxu0
          %v1321 = vadd.f32 %v1105, %v1320
          %v1322 = vpop.f32.mrf.mxu0
          %1323 = vmatprep.mubr.bf16.mxu0 %v1158
          %1324 = vmatmul.mubr.bf16.gmra.mxu0 %v1157
          %v1325 = vpop.f32.mrf.mxu0
          %v1326 = vadd.f32 %v1105, %v1325
          %v1327 = vpop.f32.mrf.mxu0
          %v1328 = vpop.f32.mrf.mxu0
          %v1329 = vadd.f32 %v1105, %v1328
          %v1330 = vpop.f32.mrf.mxu0
          %1331 = vmatprep.mubr.bf16.mxu0 %v1160
          %1332 = vmatmul.mubr.bf16.gmra.mxu0 %v1159
          %v1333 = vpop.f32.mrf.mxu0
          %v1334 = vadd.f32 %v1105, %v1333
          %v1335 = vpop.f32.mrf.mxu0
          %v1336 = vpop.f32.mrf.mxu0
          %v1337 = vadd.f32 %v1105, %v1336
          %v1338 = vpop.f32.mrf.mxu0
          %1339 = vmatprep.mubr.bf16.mxu0 %v1162
          %1340 = vmatmul.mubr.bf16.gmra.mxu0 %v1161
          %v1341 = vpop.f32.mrf.mxu0
          %v1342 = vadd.f32 %v1105, %v1341
          %v1343 = vpop.f32.mrf.mxu0
          %v1344 = vpop.f32.mrf.mxu0
          %v1345 = vadd.f32 %v1105, %v1344
          %v1346 = vpop.f32.mrf.mxu0
          %1347 = vmatprep.mubr.bf16.mxu0 %v1164
          %1348 = vmatmul.mubr.bf16.gmra.mxu0 %v1163
          %v1349 = vpop.f32.mrf.mxu0
          %v1350 = vadd.f32 %v1105, %v1349
          %v1351 = vpop.f32.mrf.mxu0
          %v1352 = vpop.f32.mrf.mxu0
          %v1353 = vadd.f32 %v1105, %v1352
          %v1354 = vpop.f32.mrf.mxu0
          %1355 = vmatprep.mubr.bf16.mxu0 %v1166
          %1356 = vmatmul.mubr.bf16.gmra.mxu0 %v1165
          %v1357 = vpop.f32.mrf.mxu0
          %v1358 = vadd.f32 %v1105, %v1357
          %v1359 = vpop.f32.mrf.mxu0
          %v1360 = vpop.f32.mrf.mxu0
          %v1361 = vadd.f32 %v1105, %v1360
          %v1362 = vpop.f32.mrf.mxu0
          %1363 = vmatprep.mubr.bf16.mxu0 %v1168
          %1364 = vmatmul.mubr.bf16.gmra.mxu0 %v1167
          %v1365 = vpop.f32.mrf.mxu0
          %v1366 = vadd.f32 %v1105, %v1365
          %v1367 = vpop.f32.mrf.mxu0
          %v1368 = vpop.f32.mrf.mxu0
          %v1369 = vadd.f32 %v1105, %v1368
          %v1370 = vpop.f32.mrf.mxu0
          %1371 = vmatprep.mubr.bf16.mxu0 %v1170
          %1372 = vmatmul.mubr.bf16.gmra.mxu0 %v1169
          %v1373 = vpop.f32.mrf.mxu0
          %v1374 = vadd.f32 %v1105, %v1373
          %v1375 = vpop.f32.mrf.mxu0
          %v1376 = vpop.f32.mrf.mxu0
          %v1377 = vadd.f32 %v1105, %v1376
          %v1378 = vpop.f32.mrf.mxu0
          %1379 = vdwg.mxu0
          %p1380 = scmp.lt.s32.totalorder %s35, 4
          %v1381 = vmax.f32 %v1318, 0.0
          %v1382 = vmax.f32 %v1321, 0.0
          %v1383 = vmax.f32 %v1326, 0.0
          %v1384 = vmax.f32 %v1329, 0.0
          %v1385 = vmax.f32 %v1334, 0.0
          %v1386 = vmax.f32 %v1337, 0.0
          %v1387 = vmax.f32 %v1342, 0.0
          %v1388 = vmax.f32 %v1345, 0.0
          %v1389 = vmax.f32 %v1350, 0.0
          %v1390 = vmax.f32 %v1353, 0.0
          %v1391 = vmax.f32 %v1358, 0.0
          %v1392 = vmax.f32 %v1361, 0.0
          %v1393 = vmax.f32 %v1366, 0.0
          %v1394 = vmax.f32 %v1369, 0.0
          %v1395 = vmax.f32 %v1374, 0.0
          %v1396 = vmax.f32 %v1377, 0.0
          %s1397 = scalar_select %p1380, 1, 0
          %v1398 = vstv %s1397
          %vm1399 = vcmp.eq.s32.totalorder %v1398, 1
          %v1400 = vsel %vm1399, %v1381, %v1318
          %v1401 = vsel %vm1399, %v1382, %v1321
          %v1402 = vsel %vm1399, %v1383, %v1326
          %v1403 = vsel %vm1399, %v1384, %v1329
          %v1404 = vsel %vm1399, %v1385, %v1334
          %v1405 = vsel %vm1399, %v1386, %v1337
          %v1406 = vsel %vm1399, %v1387, %v1342
          %v1407 = vsel %vm1399, %v1388, %v1345
          %v1408 = vsel %vm1399, %v1389, %v1350
          %v1409 = vsel %vm1399, %v1390, %v1353
          %v1410 = vsel %vm1399, %v1391, %v1358
          %v1411 = vsel %vm1399, %v1392, %v1361
          %v1412 = vsel %vm1399, %v1393, %v1366
          %v1413 = vsel %vm1399, %v1394, %v1369
          %v1414 = vsel %vm1399, %v1395, %v1374
          %v1415 = vsel %vm1399, %v1396, %v1377
          %v1416 = vpack.c.bf16 %v1401, %v1400
          %v1417 = vpack.c.bf16 %v1403, %v1402
          %v1418 = vpack.c.bf16 %v1405, %v1404
          %v1419 = vpack.c.bf16 %v1407, %v1406
          %v1420 = vpack.c.bf16 %v1409, %v1408
          %v1421 = vpack.c.bf16 %v1411, %v1410
          %v1422 = vpack.c.bf16 %v1413, %v1412
          %v1423 = vpack.c.bf16 %v1415, %v1414
          %v1432 = vunpack.c.l.b16 %v1416
          %v1433 = vunpack.c.h.b16 %v1416
          %v1434 = vunpack.c.l.b16 %v1417
          %v1435 = vunpack.c.h.b16 %v1417
          %v1436 = vunpack.c.l.b16 %v1418
          %v1437 = vunpack.c.h.b16 %v1418
          %v1438 = vunpack.c.l.b16 %v1419
          %v1439 = vunpack.c.h.b16 %v1419
          %v1440 = vunpack.c.l.b16 %v1420
          %v1441 = vunpack.c.h.b16 %v1420
          %v1442 = vunpack.c.l.b16 %v1421
          %v1443 = vunpack.c.h.b16 %v1421
          %v1444 = vunpack.c.l.b16 %v1422
          %v1445 = vunpack.c.h.b16 %v1422
          %v1446 = vunpack.c.l.b16 %v1423
          %v1447 = vunpack.c.h.b16 %v1423
          %v1448 = vpack.c.b16 %v1432, %v1432
          %v1449 = vpack.c.b16 %v1433, %v1433
          %v1450 = vpack.c.b16 %v1434, %v1434
          %v1451 = vpack.c.b16 %v1435, %v1435
          %v1452 = vpack.c.b16 %v1436, %v1436
          %v1453 = vpack.c.b16 %v1437, %v1437
          %v1454 = vpack.c.b16 %v1438, %v1438
          %v1455 = vpack.c.b16 %v1439, %v1439
          %v1456 = vpack.c.b16 %v1440, %v1440
          %v1457 = vpack.c.b16 %v1441, %v1441
          %v1458 = vpack.c.b16 %v1442, %v1442
          %v1459 = vpack.c.b16 %v1443, %v1443
          %v1460 = vpack.c.b16 %v1444, %v1444
          %v1461 = vpack.c.b16 %v1445, %v1445
          %v1462 = vpack.c.b16 %v1446, %v1446
          %v1463 = vpack.c.b16 %v1447, %v1447
          %s1480 = smul.u32 %s706, 16
          %s1481 = sadd.s32 %s742, %s1480
          %s1482 = smul.addr %s1481, 4
          %s1483 = scalar_lea.vmem [#allocation2], %s1482
          %1484 = vst [vmem:[%s1483] sm:$0xf] %v1448
          %1485 = vst [vmem:[%s1483 + $0x4] sm:$0xf] %v1449
          %1486 = vst [vmem:[%s1483 + $0x8] sm:$0xf] %v1450
          %1487 = vst [vmem:[%s1483 + $0xc] sm:$0xf] %v1451
          %1488 = vst [vmem:[%s1483 + $0x10] sm:$0xf] %v1452
          %1489 = vst [vmem:[%s1483 + $0x14] sm:$0xf] %v1453
          %1490 = vst [vmem:[%s1483 + $0x18] sm:$0xf] %v1454
          %1491 = vst [vmem:[%s1483 + $0x1c] sm:$0xf] %v1455
          %1492 = vst [vmem:[%s1483 + $0x20] sm:$0xf] %v1456
          %1493 = vst [vmem:[%s1483 + $0x24] sm:$0xf] %v1457
          %1494 = vst [vmem:[%s1483 + $0x28] sm:$0xf] %v1458
          %1495 = vst [vmem:[%s1483 + $0x2c] sm:$0xf] %v1459
          %1496 = vst [vmem:[%s1483 + $0x30] sm:$0xf] %v1460
          %1497 = vst [vmem:[%s1483 + $0x34] sm:$0xf] %v1461
          %1498 = vst [vmem:[%s1483 + $0x38] sm:$0xf] %v1462
          %1499 = vst [vmem:[%s1483 + $0x3c] sm:$0xf] %v1463
          // Predicated region
          $region101: #{tpu_custom_call.1} parent=99 // pred_check
            %p1500 = pneg %p1380
          $region102: #{tpu_custom_call.1} parent=99 // pred_check_branch
            %1502 = sbr.rel (%p1500) target = $region104
          $region103: #{tpu_custom_call.1} parent=99 // pred_region
            %s1503 = scalar_lea.vmem [#allocation3], %s604
            %v1504 = vld [vmem:[%s1503] sm:$0xff]
            %v1505 = vld [vmem:[%s1503 + $0x8] sm:$0xff]
            %v1506 = vld [vmem:[%s1503 + $0x10] sm:$0xff]
            %v1507 = vld [vmem:[%s1503 + $0x18] sm:$0xff]
            %v1508 = vld [vmem:[%s1503 + $0x20] sm:$0xff]
            %v1509 = vld [vmem:[%s1503 + $0x28] sm:$0xff]
            %v1510 = vld [vmem:[%s1503 + $0x30] sm:$0xff]
            %v1511 = vld [vmem:[%s1503 + $0x38] sm:$0xff]
            %v1512 = vld [vmem:[%s1503 + $0x40] sm:$0xff]
            %v1513 = vld [vmem:[%s1503 + $0x48] sm:$0xff]
            %v1514 = vld [vmem:[%s1503 + $0x50] sm:$0xff]
            %v1515 = vld [vmem:[%s1503 + $0x58] sm:$0xff]
            %v1516 = vld [vmem:[%s1503 + $0x60] sm:$0xff]
            %v1517 = vld [vmem:[%s1503 + $0x68] sm:$0xff]
            %v1518 = vld [vmem:[%s1503 + $0x70] sm:$0xff]
            %v1519 = vld [vmem:[%s1503 + $0x78] sm:$0xff]
            %v1520 = vadd.f32 %v1504, %v1400
            %v1521 = vadd.f32 %v1505, %v1401
            %v1522 = vadd.f32 %v1506, %v1402
            %v1523 = vadd.f32 %v1507, %v1403
            %v1524 = vadd.f32 %v1508, %v1404
            %v1525 = vadd.f32 %v1509, %v1405
            %v1526 = vadd.f32 %v1510, %v1406
            %v1527 = vadd.f32 %v1511, %v1407
            %v1528 = vadd.f32 %v1512, %v1408
            %v1529 = vadd.f32 %v1513, %v1409
            %v1530 = vadd.f32 %v1514, %v1410
            %v1531 = vadd.f32 %v1515, %v1411
            %v1532 = vadd.f32 %v1516, %v1412
            %v1533 = vadd.f32 %v1517, %v1413
            %v1534 = vadd.f32 %v1518, %v1414
            %v1535 = vadd.f32 %v1519, %v1415
            %1536 = vst [vmem:[%s1503] sm:$0xff] %v1520
            %1537 = vst [vmem:[%s1503 + $0x8] sm:$0xff] %v1521
            %1538 = vst [vmem:[%s1503 + $0x10] sm:$0xff] %v1522
            %1539 = vst [vmem:[%s1503 + $0x18] sm:$0xff] %v1523
            %1540 = vst [vmem:[%s1503 + $0x20] sm:$0xff] %v1524
            %1541 = vst [vmem:[%s1503 + $0x28] sm:$0xff] %v1525
            %1542 = vst [vmem:[%s1503 + $0x30] sm:$0xff] %v1526
            %1543 = vst [vmem:[%s1503 + $0x38] sm:$0xff] %v1527
            %1544 = vst [vmem:[%s1503 + $0x40] sm:$0xff] %v1528
            %1545 = vst [vmem:[%s1503 + $0x48] sm:$0xff] %v1529
            %1546 = vst [vmem:[%s1503 + $0x50] sm:$0xff] %v1530
            %1547 = vst [vmem:[%s1503 + $0x58] sm:$0xff] %v1531
            %1548 = vst [vmem:[%s1503 + $0x60] sm:$0xff] %v1532
            %1549 = vst [vmem:[%s1503 + $0x68] sm:$0xff] %v1533
            %1550 = vst [vmem:[%s1503 + $0x70] sm:$0xff] %v1534
            %1551 = vst [vmem:[%s1503 + $0x78] sm:$0xff] %v1535
          $region104: #{tpu_custom_call.1} parent=99 // pred_fallthru
            _
        $region100: #{tpu_custom_call.1} parent=63 // pred_fallthru
          _
        %p1552 = scmp.eq.s32.totalorder %s35, 4
        %p1553 = scmp.eq.s32.totalorder %s36, 0
        %p1554 = pnand %p1552, %p1553
        %p1555 = pneg %p1554
        // Predicated region
        $region105: #{tpu_custom_call.1} parent=63 // pred_check
          _
        $region106: #{tpu_custom_call.1} parent=63 // pred_check_branch
          %1557 = sbr.rel (%p1554) target = $region108
        $region107: #{tpu_custom_call.1} parent=63 // pred_region
          %v1558 = vld [vmem:[#allocation3] sm:$0xff]
          %v1559 = vld [vmem:[#allocation3 + $0x8] sm:$0xff]
          %v1560 = vld [vmem:[#allocation3 + $0x10] sm:$0xff]
          %v1561 = vld [vmem:[#allocation3 + $0x18] sm:$0xff]
          %v1562 = vld [vmem:[#allocation3 + $0x20] sm:$0xff]
          %v1563 = vld [vmem:[#allocation3 + $0x28] sm:$0xff]
          %v1564 = vld [vmem:[#allocation3 + $0x30] sm:$0xff]
          %v1565 = vld [vmem:[#allocation3 + $0x38] sm:$0xff]
          %v1566 = vld [vmem:[#allocation3 + $0x40] sm:$0xff]
          %v1567 = vld [vmem:[#allocation3 + $0x48] sm:$0xff]
          %v1568 = vld [vmem:[#allocation3 + $0x50] sm:$0xff]
          %v1569 = vld [vmem:[#allocation3 + $0x58] sm:$0xff]
          %v1570 = vld [vmem:[#allocation3 + $0x60] sm:$0xff]
          %v1571 = vld [vmem:[#allocation3 + $0x68] sm:$0xff]
          %v1572 = vld [vmem:[#allocation3 + $0x70] sm:$0xff]
          %v1573 = vld [vmem:[#allocation3 + $0x78] sm:$0xff]
          %v1574 = vpack.c.bf16 %v1559, %v1558
          %v1575 = vpack.c.bf16 %v1561, %v1560
          %v1576 = vpack.c.bf16 %v1563, %v1562
          %v1577 = vpack.c.bf16 %v1565, %v1564
          %v1578 = vpack.c.bf16 %v1567, %v1566
          %v1579 = vpack.c.bf16 %v1569, %v1568
          %v1580 = vpack.c.bf16 %v1571, %v1570
          %v1581 = vpack.c.bf16 %v1573, %v1572
          %v1582 = vld [vmem:[#allocation11] sm:$0xf]
          %1583 = vmatprep.subr.bf16.mxu0 0
          %1584 = vmatpush1.bf16.msra.mxu0 %v1581
          %1585 = vmatprep.subr.bf16.mxu0 0
          %1586 = vmatpush1.bf16.msra.mxu0 %v1580
          %1587 = vmatprep.subr.bf16.mxu0 0
          %1588 = vmatpush1.bf16.msra.mxu0 %v1579
          %1589 = vmatprep.subr.bf16.mxu0 0
          %1590 = vmatpush1.bf16.msra.mxu0 %v1578
          %1591 = vmatprep.subr.bf16.mxu0 0
          %1592 = vmatpush1.bf16.msra.mxu0 %v1577
          %1593 = vmatprep.subr.bf16.mxu0 0
          %1594 = vmatpush1.bf16.msra.mxu0 %v1576
          %1595 = vmatprep.subr.bf16.mxu0 0
          %1596 = vmatpush1.bf16.msra.mxu0 %v1575
          %1597 = vmatprep.subr.bf16.mxu0 0
          %1598 = vmatpush1.bf16.msra.mxu0 %v1574
          %1599 = vmatprep.subr.bf16.mxu0 0
          %1600 = vmatpush2.bf16.msra.mxu0 0
          %1601 = vmatprep.subr.bf16.mxu0 0
          %1602 = vmatpush2.bf16.msra.mxu0 0
          %1603 = vmatprep.subr.bf16.mxu0 0
          %1604 = vmatpush2.bf16.msra.mxu0 0
          %1605 = vmatprep.subr.bf16.mxu0 0
          %1606 = vmatpush2.bf16.msra.mxu0 0
          %1607 = vmatprep.subr.bf16.mxu0 0
          %1608 = vmatpush2.bf16.msra.mxu0 0
          %1609 = vmatprep.subr.bf16.mxu0 0
          %1610 = vmatpush2.bf16.msra.mxu0 0
          %1611 = vmatprep.subr.bf16.mxu0 0
          %1612 = vmatpush2.bf16.msra.mxu0 0
          %1613 = vmatprep.subr.bf16.mxu0 0
          %1614 = vmatpush2.bf16.msra.mxu0 0
          %1615 = vmatprep.mubr.bf16.mxu0 0
          %1616 = vmatmul.mubr.bf16.gmra.mxu0 %v1582
          %v1617 = vpop.f32.mrf.mxu0
          %v1618 = vadd.f32 0.0, %v1617
          %v1619 = vpop.f32.mrf.mxu0
          %v1620 = vpop.f32.mrf.mxu0
          %v1621 = vpop.f32.mrf.mxu0
          %1622 = vdwg.mxu0
          %v1623 = vpack.c.bf16 %v1618, %v1618
          %v1624 = vld [vmem:[#allocation13] sm:$0xff]
          %v1625 = vld [vmem:[#allocation13 + $0x8] sm:$0xff]
          %v1626 = vld [vmem:[#allocation13 + $0x10] sm:$0xff]
          %v1627 = vld [vmem:[#allocation13 + $0x18] sm:$0xff]
          %v1628 = vld [vmem:[#allocation13 + $0x20] sm:$0xff]
          %v1629 = vld [vmem:[#allocation13 + $0x28] sm:$0xff]
          %v1630 = vld [vmem:[#allocation13 + $0x30] sm:$0xff]
          %v1631 = vld [vmem:[#allocation13 + $0x38] sm:$0xff]
          %v1632 = vld [vmem:[#allocation13 + $0x40] sm:$0xff]
          %v1633 = vld [vmem:[#allocation13 + $0x48] sm:$0xff]
          %v1634 = vld [vmem:[#allocation13 + $0x50] sm:$0xff]
          %v1635 = vld [vmem:[#allocation13 + $0x58] sm:$0xff]
          %v1636 = vld [vmem:[#allocation13 + $0x60] sm:$0xff]
          %v1637 = vld [vmem:[#allocation13 + $0x68] sm:$0xff]
          %v1638 = vld [vmem:[#allocation13 + $0x70] sm:$0xff]
          %v1639 = vld [vmem:[#allocation13 + $0x78] sm:$0xff]
          %v1640 = vld [vmem:[%s6] sm:$0x3]
          %v1642 = vlaneseq
          %v1643 = vshrl.u32 %v1642, 7
          %v1644 = vsub.s32 0, %v1643
          %v1645 = vrot.slane %v1640, %v1644
          %v1646 = vlaneseq
          %v1647 = vshrl.u32 %v1646, 7
          %v1648 = vsub.s32 1, %v1647
          %v1649 = vrot.slane %v1640, %v1648
          %v1668 = vunpack.c.l.b16 %v1624
          %v1669 = vunpack.c.h.b16 %v1624
          %v1670 = vunpack.c.l.b16 %v1625
          %v1671 = vunpack.c.h.b16 %v1625
          %v1672 = vunpack.c.l.b16 %v1626
          %v1673 = vunpack.c.h.b16 %v1626
          %v1674 = vunpack.c.l.b16 %v1627
          %v1675 = vunpack.c.h.b16 %v1627
          %v1676 = vunpack.c.l.b16 %v1628
          %v1677 = vunpack.c.h.b16 %v1628
          %v1678 = vunpack.c.l.b16 %v1629
          %v1679 = vunpack.c.h.b16 %v1629
          %v1680 = vunpack.c.l.b16 %v1630
          %v1681 = vunpack.c.h.b16 %v1630
          %v1682 = vunpack.c.l.b16 %v1631
          %v1683 = vunpack.c.h.b16 %v1631
          %v1684 = vunpack.c.l.b16 %v1632
          %v1685 = vunpack.c.h.b16 %v1632
          %v1686 = vunpack.c.l.b16 %v1633
          %v1687 = vunpack.c.h.b16 %v1633
          %v1688 = vunpack.c.l.b16 %v1634
          %v1689 = vunpack.c.h.b16 %v1634
          %v1690 = vunpack.c.l.b16 %v1635
          %v1691 = vunpack.c.h.b16 %v1635
          %v1692 = vunpack.c.l.b16 %v1636
          %v1693 = vunpack.c.h.b16 %v1636
          %v1694 = vunpack.c.l.b16 %v1637
          %v1695 = vunpack.c.h.b16 %v1637
          %v1696 = vunpack.c.l.b16 %v1638
          %v1697 = vunpack.c.h.b16 %v1638
          %v1698 = vunpack.c.l.b16 %v1639
          %v1699 = vunpack.c.h.b16 %v1639
          %v1700 = vpack.c.b16 %v1670, %v1668
          %v1701 = vpack.c.b16 %v1671, %v1669
          %v1702 = vpack.c.b16 %v1674, %v1672
          %v1703 = vpack.c.b16 %v1675, %v1673
          %v1704 = vpack.c.b16 %v1678, %v1676
          %v1705 = vpack.c.b16 %v1679, %v1677
          %v1706 = vpack.c.b16 %v1682, %v1680
          %v1707 = vpack.c.b16 %v1683, %v1681
          %v1708 = vpack.c.b16 %v1686, %v1684
          %v1709 = vpack.c.b16 %v1687, %v1685
          %v1710 = vpack.c.b16 %v1690, %v1688
          %v1711 = vpack.c.b16 %v1691, %v1689
          %v1712 = vpack.c.b16 %v1694, %v1692
          %v1713 = vpack.c.b16 %v1695, %v1693
          %v1714 = vpack.c.b16 %v1698, %v1696
          %v1715 = vpack.c.b16 %v1699, %v1697
          %1732 = vmatprep.subr.bf16.mxu0 %v1715
          %1733 = vmatpush1.bf16.msra.mxu0 %v1714
          %1734 = vmatprep.subr.bf16.mxu0 %v1713
          %1735 = vmatpush1.bf16.msra.mxu0 %v1712
          %1736 = vmatprep.subr.bf16.mxu0 %v1711
          %1737 = vmatpush1.bf16.msra.mxu0 %v1710
          %1738 = vmatprep.subr.bf16.mxu0 %v1709
          %1739 = vmatpush1.bf16.msra.mxu0 %v1708
          %1740 = vmatprep.subr.bf16.mxu0 %v1707
          %1741 = vmatpush1.bf16.msra.mxu0 %v1706
          %1742 = vmatprep.subr.bf16.mxu0 %v1705
          %1743 = vmatpush1.bf16.msra.mxu0 %v1704
          %1744 = vmatprep.subr.bf16.mxu0 %v1703
          %1745 = vmatpush1.bf16.msra.mxu0 %v1702
          %1746 = vmatprep.subr.bf16.mxu0 %v1701
          %1747 = vmatpush1.bf16.msra.mxu0 %v1700
          %1748 = vmatprep.subr.bf16.mxu0 0
          %1749 = vmatpush2.bf16.msra.mxu0 0
          %1750 = vmatprep.subr.bf16.mxu0 0
          %1751 = vmatpush2.bf16.msra.mxu0 0
          %1752 = vmatprep.subr.bf16.mxu0 0
          %1753 = vmatpush2.bf16.msra.mxu0 0
          %1754 = vmatprep.subr.bf16.mxu0 0
          %1755 = vmatpush2.bf16.msra.mxu0 0
          %1756 = vmatprep.subr.bf16.mxu0 0
          %1757 = vmatpush2.bf16.msra.mxu0 0
          %1758 = vmatprep.subr.bf16.mxu0 0
          %1759 = vmatpush2.bf16.msra.mxu0 0
          %1760 = vmatprep.subr.bf16.mxu0 0
          %1761 = vmatpush2.bf16.msra.mxu0 0
          %1762 = vmatprep.subr.bf16.mxu0 0
          %1763 = vmatpush2.bf16.msra.mxu0 0
          %1764 = vmatprep.mubr.bf16.mxu0 0
          %1765 = vmatmul.mubr.bf16.gmra.mxu0 %v1623
          %v1766 = vpop.f32.mrf.mxu0
          %v1767 = vadd.f32 %v1645, %v1766
          %v1768 = vpop.f32.mrf.mxu0
          %v1769 = vadd.f32 %v1649, %v1768
          %v1770 = vpop.f32.mrf.mxu0
          %v1771 = vpop.f32.mrf.mxu0
          %1772 = vdwg.mxu0
          %v1773 = vmax.f32 %v1767, 0.0
          %v1774 = vmax.f32 %v1769, 0.0
          %v1775 = vpack.c.bf16 %v1773, %v1773
          %v1776 = vpack.c.bf16 %v1774, %v1774
          %v1777 = vld [vmem:[#allocation14] sm:$0xf]
          %v1778 = vld [vmem:[#allocation14 + $0x4] sm:$0xf]
          %v1779 = vld [vmem:[#allocation14 + $0x8] sm:$0xf]
          %v1780 = vld [vmem:[#allocation14 + $0xc] sm:$0xf]
          %v1781 = vld [vmem:[#allocation14 + $0x10] sm:$0xf]
          %v1782 = vld [vmem:[#allocation14 + $0x14] sm:$0xf]
          %v1783 = vld [vmem:[#allocation14 + $0x18] sm:$0xf]
          %v1784 = vld [vmem:[#allocation14 + $0x1c] sm:$0xf]
          %v1785 = vld [vmem:[#allocation14 + $0x20] sm:$0xf]
          %v1786 = vld [vmem:[#allocation14 + $0x24] sm:$0xf]
          %v1787 = vld [vmem:[#allocation14 + $0x28] sm:$0xf]
          %v1788 = vld [vmem:[#allocation14 + $0x2c] sm:$0xf]
          %v1789 = vld [vmem:[#allocation14 + $0x30] sm:$0xf]
          %v1790 = vld [vmem:[#allocation14 + $0x34] sm:$0xf]
          %v1791 = vld [vmem:[#allocation14 + $0x38] sm:$0xf]
          %v1792 = vld [vmem:[#allocation14 + $0x3c] sm:$0xf]
          %v1793 = vld [vmem:[#allocation14 + $0x40] sm:$0xf]
          %v1794 = vld [vmem:[#allocation14 + $0x44] sm:$0xf]
          %v1795 = vld [vmem:[#allocation14 + $0x48] sm:$0xf]
          %v1796 = vld [vmem:[#allocation14 + $0x4c] sm:$0xf]
          %v1797 = vld [vmem:[#allocation14 + $0x50] sm:$0xf]
          %v1798 = vld [vmem:[#allocation14 + $0x54] sm:$0xf]
          %v1799 = vld [vmem:[#allocation14 + $0x58] sm:$0xf]
          %v1800 = vld [vmem:[#allocation14 + $0x5c] sm:$0xf]
          %v1801 = vld [vmem:[#allocation14 + $0x60] sm:$0xf]
          %v1802 = vld [vmem:[#allocation14 + $0x64] sm:$0xf]
          %v1803 = vld [vmem:[#allocation14 + $0x68] sm:$0xf]
          %v1804 = vld [vmem:[#allocation14 + $0x6c] sm:$0xf]
          %v1805 = vld [vmem:[#allocation14 + $0x70] sm:$0xf]
          %v1806 = vld [vmem:[#allocation14 + $0x74] sm:$0xf]
          %v1807 = vld [vmem:[#allocation14 + $0x78] sm:$0xf]
          %v1808 = vld [vmem:[#allocation14 + $0x7c] sm:$0xf]
          %v1809 = vld [vmem:[%s8] sm:$0x1]
          %v1811 = vlaneseq
          %v1812 = vshrl.u32 %v1811, 7
          %v1813 = vsub.s32 0, %v1812
          %v1814 = vrot.slane %v1809, %v1813
          %v1848 = vunpack.c.l.b16 %v1777
          %v1849 = vunpack.c.l.b16 %v1778
          %v1850 = vunpack.c.l.b16 %v1779
          %v1851 = vunpack.c.l.b16 %v1780
          %v1852 = vunpack.c.l.b16 %v1781
          %v1853 = vunpack.c.l.b16 %v1782
          %v1854 = vunpack.c.l.b16 %v1783
          %v1855 = vunpack.c.l.b16 %v1784
          %v1856 = vunpack.c.l.b16 %v1785
          %v1857 = vunpack.c.l.b16 %v1786
          %v1858 = vunpack.c.l.b16 %v1787
          %v1859 = vunpack.c.l.b16 %v1788
          %v1860 = vunpack.c.l.b16 %v1789
          %v1861 = vunpack.c.l.b16 %v1790
          %v1862 = vunpack.c.l.b16 %v1791
          %v1863 = vunpack.c.l.b16 %v1792
          %v1864 = vunpack.c.l.b16 %v1793
          %v1865 = vunpack.c.l.b16 %v1794
          %v1866 = vunpack.c.l.b16 %v1795
          %v1867 = vunpack.c.l.b16 %v1796
          %v1868 = vunpack.c.l.b16 %v1797
          %v1869 = vunpack.c.l.b16 %v1798
          %v1870 = vunpack.c.l.b16 %v1799
          %v1871 = vunpack.c.l.b16 %v1800
          %v1872 = vunpack.c.l.b16 %v1801
          %v1873 = vunpack.c.l.b16 %v1802
          %v1874 = vunpack.c.l.b16 %v1803
          %v1875 = vunpack.c.l.b16 %v1804
          %v1876 = vunpack.c.l.b16 %v1805
          %v1877 = vunpack.c.l.b16 %v1806
          %v1878 = vunpack.c.l.b16 %v1807
          %v1879 = vunpack.c.l.b16 %v1808
          %v1880 = vpack.c.b16 %v1849, %v1848
          %v1881 = vpack.c.b16 %v1851, %v1850
          %v1882 = vpack.c.b16 %v1853, %v1852
          %v1883 = vpack.c.b16 %v1855, %v1854
          %v1884 = vpack.c.b16 %v1857, %v1856
          %v1885 = vpack.c.b16 %v1859, %v1858
          %v1886 = vpack.c.b16 %v1861, %v1860
          %v1887 = vpack.c.b16 %v1863, %v1862
          %v1888 = vpack.c.b16 %v1865, %v1864
          %v1889 = vpack.c.b16 %v1867, %v1866
          %v1890 = vpack.c.b16 %v1869, %v1868
          %v1891 = vpack.c.b16 %v1871, %v1870
          %v1892 = vpack.c.b16 %v1873, %v1872
          %v1893 = vpack.c.b16 %v1875, %v1874
          %v1894 = vpack.c.b16 %v1877, %v1876
          %v1895 = vpack.c.b16 %v1879, %v1878
          %1912 = vmatprep.subr.bf16.mxu0 0
          %1913 = vmatpush1.bf16.msra.mxu0 %v1887
          %1914 = vmatprep.subr.bf16.mxu0 0
          %1915 = vmatpush1.bf16.msra.mxu0 %v1886
          %1916 = vmatprep.subr.bf16.mxu0 0
          %1917 = vmatpush1.bf16.msra.mxu0 %v1885
          %1918 = vmatprep.subr.bf16.mxu0 0
          %1919 = vmatpush1.bf16.msra.mxu0 %v1884
          %1920 = vmatprep.subr.bf16.mxu0 0
          %1921 = vmatpush1.bf16.msra.mxu0 %v1883
          %1922 = vmatprep.subr.bf16.mxu0 0
          %1923 = vmatpush1.bf16.msra.mxu0 %v1882
          %1924 = vmatprep.subr.bf16.mxu0 0
          %1925 = vmatpush1.bf16.msra.mxu0 %v1881
          %1926 = vmatprep.subr.bf16.mxu0 0
          %1927 = vmatpush1.bf16.msra.mxu0 %v1880
          %1928 = vmatprep.subr.bf16.mxu0 0
          %1929 = vmatpush2.bf16.msra.mxu0 %v1895
          %1930 = vmatprep.subr.bf16.mxu0 0
          %1931 = vmatpush2.bf16.msra.mxu0 %v1894
          %1932 = vmatprep.subr.bf16.mxu0 0
          %1933 = vmatpush2.bf16.msra.mxu0 %v1893
          %1934 = vmatprep.subr.bf16.mxu0 0
          %1935 = vmatpush2.bf16.msra.mxu0 %v1892
          %1936 = vmatprep.subr.bf16.mxu0 0
          %1937 = vmatpush2.bf16.msra.mxu0 %v1891
          %1938 = vmatprep.subr.bf16.mxu0 0
          %1939 = vmatpush2.bf16.msra.mxu0 %v1890
          %1940 = vmatprep.subr.bf16.mxu0 0
          %1941 = vmatpush2.bf16.msra.mxu0 %v1889
          %1942 = vmatprep.subr.bf16.mxu0 0
          %1943 = vmatpush2.bf16.msra.mxu0 %v1888
          %1944 = vmatprep.mubr.bf16.mxu0 %v1776
          %1945 = vmatmul.mubr.bf16.gmra.mxu0 %v1775
          %v1946 = vpop.f32.mrf.mxu0
          %v1947 = vadd.f32 %v1814, %v1946
          %v1948 = vpop.f32.mrf.mxu0
          %v1949 = vpop.f32.mrf.mxu0
          %v1950 = vpop.f32.mrf.mxu0
          %1951 = vdwg.mxu0
          %v1952 = vmax.f32 %v1947, 0.0
          %v1953 = vpack.c.bf16 %v1952, %v1952
          %v1954 = vld [vmem:[#allocation16] sm:$0xf]
          %v1955 = vld [vmem:[#allocation16 + $0x4] sm:$0xf]
          %v1956 = vld [vmem:[#allocation16 + $0x8] sm:$0xf]
          %v1957 = vld [vmem:[#allocation16 + $0xc] sm:$0xf]
          %v1958 = vld [vmem:[#allocation16 + $0x10] sm:$0xf]
          %v1959 = vld [vmem:[#allocation16 + $0x14] sm:$0xf]
          %v1960 = vld [vmem:[#allocation16 + $0x18] sm:$0xf]
          %v1961 = vld [vmem:[#allocation16 + $0x1c] sm:$0xf]
          %v1962 = vld [vmem:[#allocation16 + $0x20] sm:$0xf]
          %v1963 = vld [vmem:[#allocation16 + $0x24] sm:$0xf]
          %v1964 = vld [vmem:[#allocation16 + $0x28] sm:$0xf]
          %v1965 = vld [vmem:[#allocation16 + $0x2c] sm:$0xf]
          %v1966 = vld [vmem:[#allocation16 + $0x30] sm:$0xf]
          %v1967 = vld [vmem:[#allocation16 + $0x34] sm:$0xf]
          %v1968 = vld [vmem:[#allocation16 + $0x38] sm:$0xf]
          %v1969 = vld [vmem:[#allocation16 + $0x3c] sm:$0xf]
          %v1970 = vld [vmem:[%s10] sm:$0x1]
          %v1972 = vlaneseq
          %v1973 = vshrl.u32 %v1972, 7
          %v1974 = vsub.s32 0, %v1973
          %v1975 = vrot.slane %v1970, %v1974
          %v1993 = vunpack.c.l.b16 %v1954
          %v1994 = vunpack.c.l.b16 %v1955
          %v1995 = vunpack.c.l.b16 %v1956
          %v1996 = vunpack.c.l.b16 %v1957
          %v1997 = vunpack.c.l.b16 %v1958
          %v1998 = vunpack.c.l.b16 %v1959
          %v1999 = vunpack.c.l.b16 %v1960
          %v2000 = vunpack.c.l.b16 %v1961
          %v2001 = vunpack.c.l.b16 %v1962
          %v2002 = vunpack.c.l.b16 %v1963
          %v2003 = vunpack.c.l.b16 %v1964
          %v2004 = vunpack.c.l.b16 %v1965
          %v2005 = vunpack.c.l.b16 %v1966
          %v2006 = vunpack.c.l.b16 %v1967
          %v2007 = vunpack.c.l.b16 %v1968
          %v2008 = vunpack.c.l.b16 %v1969
          %v2009 = vpack.c.b16 %v1994, %v1993
          %v2010 = vpack.c.b16 %v1996, %v1995
          %v2011 = vpack.c.b16 %v1998, %v1997
          %v2012 = vpack.c.b16 %v2000, %v1999
          %v2013 = vpack.c.b16 %v2002, %v2001
          %v2014 = vpack.c.b16 %v2004, %v2003
          %v2015 = vpack.c.b16 %v2006, %v2005
          %v2016 = vpack.c.b16 %v2008, %v2007
          %2025 = vmatprep.subr.bf16.mxu0 0
          %2026 = vmatpush1.bf16.msra.mxu0 %v2016
          %2027 = vmatprep.subr.bf16.mxu0 0
          %2028 = vmatpush1.bf16.msra.mxu0 %v2015
          %2029 = vmatprep.subr.bf16.mxu0 0
          %2030 = vmatpush1.bf16.msra.mxu0 %v2014
          %2031 = vmatprep.subr.bf16.mxu0 0
          %2032 = vmatpush1.bf16.msra.mxu0 %v2013
          %2033 = vmatprep.subr.bf16.mxu0 0
          %2034 = vmatpush1.bf16.msra.mxu0 %v2012
          %2035 = vmatprep.subr.bf16.mxu0 0
          %2036 = vmatpush1.bf16.msra.mxu0 %v2011
          %2037 = vmatprep.subr.bf16.mxu0 0
          %2038 = vmatpush1.bf16.msra.mxu0 %v2010
          %2039 = vmatprep.subr.bf16.mxu0 0
          %2040 = vmatpush1.bf16.msra.mxu0 %v2009
          %2041 = vmatprep.subr.bf16.mxu0 0
          %2042 = vmatpush2.bf16.msra.mxu0 0
          %2043 = vmatprep.subr.bf16.mxu0 0
          %2044 = vmatpush2.bf16.msra.mxu0 0
          %2045 = vmatprep.subr.bf16.mxu0 0
          %2046 = vmatpush2.bf16.msra.mxu0 0
          %2047 = vmatprep.subr.bf16.mxu0 0
          %2048 = vmatpush2.bf16.msra.mxu0 0
          %2049 = vmatprep.subr.bf16.mxu0 0
          %2050 = vmatpush2.bf16.msra.mxu0 0
          %2051 = vmatprep.subr.bf16.mxu0 0
          %2052 = vmatpush2.bf16.msra.mxu0 0
          %2053 = vmatprep.subr.bf16.mxu0 0
          %2054 = vmatpush2.bf16.msra.mxu0 0
          %2055 = vmatprep.subr.bf16.mxu0 0
          %2056 = vmatpush2.bf16.msra.mxu0 0
          %2057 = vmatprep.mubr.bf16.mxu0 0
          %2058 = vmatmul.mubr.bf16.gmra.mxu0 %v1953
          %v2059 = vpop.f32.mrf.mxu0
          %v2060 = vadd.f32 %v1975, %v2059
          %v2061 = vpop.f32.mrf.mxu0
          %v2062 = vpop.f32.mrf.mxu0
          %v2063 = vpop.f32.mrf.mxu0
          %2064 = vdwg.mxu0
          %2065 = vst [vmem:[#allocation17] sm:$0xff] %v2060
        $region108: #{tpu_custom_call.1} parent=63 // pred_fallthru
          _
        // Predicated region
        $region109: #{tpu_custom_call.1} parent=63 // pred_check
          %p2066 = pneg %p327
        $region110: #{tpu_custom_call.1} parent=63 // pred_check_branch
          %2068 = sbr.rel (%p2066) target = $region112
        $region111: #{tpu_custom_call.1} parent=63 // pred_region
          %s2070 = ssub.s32 128, 128
          %2071 = vsyncadd [#allocation7], %s2070
          %s2073 = sshll.u32 [#allocation17], 4
          %s2074 = int_to_ptr.vmem [resolvable:$true] %s2073
          %2076 = dma.vmem_to_hbm [thread:$0]  %s2074, 128, %s11, [#allocation7]
        $region112: #{tpu_custom_call.1} parent=63 // pred_fallthru
          _
        // Predicated region
        $region113: #{tpu_custom_call.1} parent=63 // pred_check
          %p2077 = pneg %p327
        $region114: #{tpu_custom_call.1} parent=63 // pred_check_branch
          %2079 = sbr.rel (%p2077) target = $region116
        $region115: #{tpu_custom_call.1} parent=63 // pred_region
          %2080 = dma.done [#allocation7], 128
        $region116: #{tpu_custom_call.1} parent=63 // pred_fallthru
          _
      $region64: #{tpu_custom_call.1} parent=5 // pred_fallthru
        _
      %p2081 = scmp.le.s32.totalorder 2, %s26
      // Predicated region
      $region117: #{tpu_custom_call.1} parent=5 // pred_check
        %p2082 = pneg %p2081
      $region118: #{tpu_custom_call.1} parent=5 // pred_check_branch
        %2084 = sbr.rel (%p2082) target = $region120
      $region119: #{tpu_custom_call.1} parent=5 // pred_region
        %s2085 = ssub.s32 %s26, 2
      $region120: #{tpu_custom_call.1} parent=5 // pred_fallthru
        _
    $region6: #{tpu_custom_call.1} parent=1 // loop_footer
      %s30 = sadd.s32 1, %s26
    $region7: #{tpu_custom_call.1} parent=1 // loop_footer_branch
      %25 = sbr.rel target = $region3
    $region8: #{tpu_custom_call.1} parent=1 // loop_exit
      _
    %2086 = vsyncpa [#allocation6], 1
    %s2087 = scalar_lea.sflag [#allocation6], 1
    %2088 = vsyncpa %s2087, 1
    %2089 = vsyncpa [#allocation9], 1
    %s2090 = scalar_lea.sflag [#allocation9], 1
    %2091 = vsyncpa %s2090, 1
    %2092 = vsyncpa [#allocation12], 1
    %2093 = vsyncpa [#allocation15], 1
    %2094 = vsyncpa [#allocation7], 1
    %s2095 = scalar_lea.sflag [#allocation7], 1
    %2096 = vsyncpa %s2095, 1

</llo_original>
